<compile_context>
chip_gen: v5e
topology: v5e:2x2
jax: 0.10.0
libtpu: 0.0.40
codegen_flags: <defaults>
</compile_context>

<pallas_src>
import functools

import jax
import jax.numpy as jnp
from jax import lax
from jax.experimental import pallas as pl
from jax.experimental.pallas import tpu as pltpu

EPS = 1e-5  # PyTorch BatchNorm default


def _vmem_spec():
    # Whole-array, VMEM-resident operand (tiny shapes here; no grid needed).
    return pl.BlockSpec(memory_space=pltpu.MemorySpace.VMEM)


def _round_up(x, m):
    return (x + m - 1) // m * m


# ---------------------------------------------------------------------------
# Fully fused ResModule kernel
#
# Wide layout: the zero-padded per-image grid (N, H+2, W+2) is flattened onto
# the lane axis; column q of the Pw-wide compute frame is padded-grid index q
# (q < pp = N*(H+2)*(W+2)).  Inside the activation scratch `abuf` that frame
# sits at a 128-aligned column `base`, with zero margins on both sides, so the
# 9 taps of a 3x3 conv are static in-bounds lane windows and zero padding is
# implemented by the (always zero) border/margin columns.  `mask` is 1.0
# exactly at the valid interior pixels of the Pw frame.
# ---------------------------------------------------------------------------
def _res_module_kernel(*refs, depth, use_bn, lrelu_a, inv_nvalid, base, pw,
                       row_stride):
    n_per = 8 if use_bn else 6
    mask_ref, x_ref = refs[0], refs[1]
    blk_refs = refs[2:2 + depth * n_per]
    o_ref, abuf, rbuf = refs[2 + depth * n_per:]

    mask_w = mask_ref[...]                       # (1, Pw) f32, 1 at valid pixels

    # bf16 activation frame with zero margins (the margins/borders implement the
    # 3x3 convs' zero padding).  x_ref already carries the zero margins.
    abuf[...] = x_ref[...]

    def lrelu(y):                                # max(y, a*y): 2 VPU ops, not 3
        return jnp.maximum(y, lrelu_a * y)

    def conv3x3(w_ref):
        # One deep-K MXU matmul: stack the 9 shifted lane windows along K
        # (each window loaded exactly once) -> (Cout, 9C) x (9C, Pw).
        wins = []
        for dy in range(3):
            for dx in range(3):
                off = (dy - 1) * row_stride + (dx - 1)        # static int
                wins.append(abuf[:, base + off:base + off + pw])
        stacked = jnp.concatenate(wins, axis=0)               # (9C, Pw) bf16
        return jnp.dot(w_ref[...], stacked,
                       preferred_element_type=jnp.float32)    # (C, Pw) f32

    def batchnorm(y, g_ref, be_ref):
        # Train-mode BN over the valid (N,H,W) pixels: single-pass masked
        # moments (f32), folded into per-channel scale/shift so the full-width
        # apply is one multiply-add.
        ym = y * mask_w
        mean = jnp.sum(ym, axis=1, keepdims=True) * inv_nvalid
        ex2 = jnp.sum(ym * y, axis=1, keepdims=True) * inv_nvalid
        scale = g_ref[...] * lax.rsqrt(ex2 - mean * mean + EPS)
        shift = be_ref[...] - mean * scale
        return y * scale + shift

    for blk in range(depth):                      # static unroll over blocks
        p = blk_refs[blk * n_per:(blk + 1) * n_per]
        if use_bn:
            w0, b0, w1, g1, be1, w2, g2, be2 = p
            b1 = b2 = None
        else:
            w0, b0, w1, b1, w2, b2 = p
            g1 = be1 = g2 = be2 = None

        # ---- c0: 1x1 conv -> residual (masked so margins/borders stay zero) --
        res = jnp.dot(w0[...], abuf[:, base:base + pw],
                      preferred_element_type=jnp.float32)
        res = (res + b0[...]) * mask_w                          # (C, Pw) f32
        rbuf[...] = res                                         # bounded live range
        abuf[:, base:base + pw] = res.astype(jnp.bfloat16)      # aligned store

        # ---- c1 (+BN1) + LeakyReLU -------------------------------------------
        y1 = conv3x3(w1)
        y1 = batchnorm(y1, g1, be1) if use_bn else y1 + b1[...]
        out1 = lrelu(y1) * mask_w
        abuf[:, base:base + pw] = out1.astype(jnp.bfloat16)     # aligned store

        # ---- c2 (+BN2) + residual + LeakyReLU ----------------------------------
        y2 = conv3x3(w2)
        y2 = batchnorm(y2, g2, be2) if use_bn else y2 + b2[...]
        out2 = lrelu(y2 + rbuf[...]) * mask_w

        if blk == depth - 1:
            o_ref[...] = out2            # single full-width, lane-aligned store
        else:
            abuf[:, base:base + pw] = out2.astype(jnp.bfloat16)


# ---------------------------------------------------------------------------
# Layout helpers (module boundary only; blocks chain inside the kernel)
# ---------------------------------------------------------------------------
def _nchw_to_wide_bf16(x_nchw, c_rows, base, pw_pad):
    # NCHW -> (C, Pw_pad) bf16: zero-pad channels to c_rows and space by 1,
    # flatten (N, H+2, W+2) onto lanes at column `base`, zero margins elsewhere.
    nb, c, h, w = x_nchw.shape
    xp = jnp.pad(x_nchw, ((0, 0), (0, c_rows - c), (1, 1), (1, 1)))
    flat = jnp.transpose(xp, (1, 0, 2, 3)).reshape(c_rows, nb * (h + 2) * (w + 2))
    wide = jnp.pad(flat, ((0, 0), (base, pw_pad - base - flat.shape[1])))
    return wide.astype(jnp.bfloat16)


def _valid_mask(nb, h, w, pw):
    m = jnp.pad(jnp.ones((1, nb, h, w), jnp.float32),
                ((0, 0), (0, 0), (1, 1), (1, 1)))
    flat = m.reshape(1, nb * (h + 2) * (w + 2))
    return jnp.pad(flat, ((0, 0), (0, pw - flat.shape[1])))


def _wide_to_nchw(y_wide, nb, h, w):
    c = y_wide.shape[0]
    pp = nb * (h + 2) * (w + 2)
    grid4 = y_wide[:, :pp].reshape(c, nb, h + 2, w + 2)
    return jnp.transpose(grid4[:, :, 1:h + 1, 1:w + 1], (1, 0, 2, 3))


# ---------------------------------------------------------------------------
# Module wrapper: one pallas_call for the whole ResModule
# ---------------------------------------------------------------------------
def res_module_forward(x_nchw, kparams, *, lrelu_a=0.01, batch_norm=True):
    nb, cin, h, w = x_nchw.shape
    cout = kparams[0]["w0"].shape[0]
    if cout < cin:
        raise NotImplementedError("kernel assumes output_channels >= input_channels")

    pp = nb * (h + 2) * (w + 2)
    pw = _round_up(pp, 128)            # lane-aligned compute frame
    base = _round_up(w + 3, 128)       # 128-aligned margin >= max 3x3 tap shift
    pw_pad = pw + 2 * base

    mask = _valid_mask(nb, h, w, pw)
    xw = _nchw_to_wide_bf16(x_nchw, cout, base, pw_pad)

    ops = [mask, xw]
    for p in kparams:
        if batch_norm:   # conv biases cancel exactly inside train-mode BN
            ops += [p["w0"], p["b0"], p["w1"], p["g1"], p["be1"],
                    p["w2"], p["g2"], p["be2"]]
        else:
            ops += [p["w0"], p["b0"], p["w1"], p["b1"], p["w2"], p["b2"]]

    kern = functools.partial(
        _res_module_kernel, depth=len(kparams), use_bn=batch_norm,
        lrelu_a=lrelu_a, inv_nvalid=1.0 / float(nb * h * w),
        base=base, pw=pw, row_stride=w + 2)

    out_wide = pl.pallas_call(
        kern,
        out_shape=jax.ShapeDtypeStruct((cout, pw), jnp.float32),
        in_specs=[_vmem_spec()] * len(ops),
        out_specs=_vmem_spec(),
        scratch_shapes=[pltpu.VMEM((cout, pw_pad), jnp.bfloat16),  # activation frame
                        pltpu.VMEM((cout, pw), jnp.float32)],      # residual
        # Working set (~0.3 MiB) is far below the default scoped-VMEM limit on
        # every TPU generation, so no vmem_limit_bytes override is set.
    )(*ops)
    return _wide_to_nchw(out_wide, nb, h, w)


# ---------------------------------------------------------------------------
# Deterministic parameters (PyTorch-like layouts) + kernel-layout prep
# ---------------------------------------------------------------------------
def init_resblock_params(key, cin, cout):
    ks = jax.random.split(key, 10)

    def nrm(k, shape, scale):
        return scale * jax.random.normal(k, shape, jnp.float32)

    return {
        "w0": nrm(ks[0], (cout, cin, 1, 1), 1.0 / (cin ** 0.5)),   # OIHW
        "b0": nrm(ks[1], (cout,), 0.1),
        "w1": nrm(ks[2], (cout, cout, 3, 3), 1.0 / ((9 * cout) ** 0.5)),
        "b1": nrm(ks[3], (cout,), 0.1),
        "g1": 1.0 + 0.1 * jax.random.normal(ks[4], (cout,), jnp.float32),
        "be1": nrm(ks[5], (cout,), 0.1),
        "w2": nrm(ks[6], (cout, cout, 3, 3), 1.0 / ((9 * cout) ** 0.5)),
        "b2": nrm(ks[7], (cout,), 0.1),
        "g2": 1.0 + 0.1 * jax.random.normal(ks[8], (cout,), jnp.float32),
        "be2": nrm(ks[9], (cout,), 0.1),
    }


def prep_block_params(p, cin_pad):
    # Kernel layouts: 1x1 weight (Cout, cin_pad) bf16 (zero-padded in-channels);
    # 3x3 weights flattened to (Cout, 9*Cin) bf16 with column block t = dy*3+dx;
    # biases / BN affine params as (Cout, 1) f32 columns.
    def flat3x3(wt):
        o, i = wt.shape[:2]
        taps = jnp.transpose(wt, (2, 3, 0, 1)).reshape(9, o, i)     # t = dy*3+dx
        return jnp.transpose(taps, (1, 0, 2)).reshape(o, 9 * i).astype(jnp.bfloat16)

    col = lambda v: v.reshape(-1, 1).astype(jnp.float32)
    w0 = p["w0"][:, :, 0, 0]
    w0 = jnp.pad(w0, ((0, 0), (0, cin_pad - w0.shape[1]))).astype(jnp.bfloat16)
    return {
        "w0": w0, "b0": col(p["b0"]),
        "w1": flat3x3(p["w1"]), "b1": col(p["b1"]),
        "g1": col(p["g1"]), "be1": col(p["be1"]),
        "w2": flat3x3(p["w2"]), "b2": col(p["b2"]),
        "g2": col(p["g2"]), "be2": col(p["be2"]),
    }


# ---------------------------------------------------------------------------
# Plain-JAX f32 reference (mirrors the PyTorch forward) for a sanity check
# ---------------------------------------------------------------------------
def _ref_res_module(x, params, *, lrelu_a, batch_norm):
    def conv(x, w, b, pad):
        y = lax.conv_general_dilated(
            x, w, window_strides=(1, 1), padding=[(pad, pad), (pad, pad)],
            dimension_numbers=("NCHW", "OIHW", "NCHW"))
        return y + b.reshape(1, -1, 1, 1)

    def bn(y, g, be):
        mu = jnp.mean(y, axis=(0, 2, 3), keepdims=True)
        var = jnp.var(y, axis=(0, 2, 3), keepdims=True)   # biased (train mode)
        return (g.reshape(1, -1, 1, 1) * (y - mu) * lax.rsqrt(var + EPS)
                + be.reshape(1, -1, 1, 1))

    lrelu = lambda t: jnp.where(t >= 0, t, lrelu_a * t)
    for p in params:
        res = conv(x, p["w0"], p["b0"], 0)
        out = conv(res, p["w1"], p["b1"], 1)
        if batch_norm:
            out = bn(out, p["g1"], p["be1"])
        out = lrelu(out)
        out = conv(out, p["w2"], p["b2"], 1)
        if batch_norm:
            out = bn(out, p["g2"], p["be2"])
        x = lrelu(out + res)
    return x


if __name__ == "__main__":
    # ResModule(ndim=2, res_depth=2, input_channels=4, output_channels=8)
    N, CIN, H, W = 2, 4, 16, 16
    COUT, DEPTH = 8, 2

    key = jax.random.PRNGKey(0)
    kx, kp = jax.random.split(key)
    x = jax.random.normal(kx, (N, CIN, H, W), jnp.float32)   # NCHW, as PyTorch

    pkeys = jax.random.split(kp, DEPTH)
    torch_like, kernel_params = [], []
    cin = CIN
    for i in range(DEPTH):
        p = init_resblock_params(pkeys[i], cin, COUT)
        torch_like.append(p)
        kernel_params.append(prep_block_params(p, cin_pad=COUT))
        cin = COUT

    # batch_norm=True (module default)
    fwd_bn = jax.jit(functools.partial(res_module_forward,
                                       lrelu_a=0.01, batch_norm=True))
    out = fwd_bn(x, kernel_params)
    jax.block_until_ready(out)
    assert out.shape == (N, COUT, H, W)
    assert out.dtype == jnp.float32

    ref = _ref_res_module(x, torch_like, lrelu_a=0.01, batch_norm=True)
    err = float(jnp.max(jnp.abs(out - ref)))
    assert err < 0.1, f"[bn=True] max |kernel - reference| = {err}"

    # batch_norm=False path
    fwd_nobn = jax.jit(functools.partial(res_module_forward,
                                         lrelu_a=0.01, batch_norm=False))
    out2 = fwd_nobn(x, kernel_params)
    jax.block_until_ready(out2)
    ref2 = _ref_res_module(x, torch_like, lrelu_a=0.01, batch_norm=False)
    err2 = float(jnp.max(jnp.abs(out2 - ref2)))
    assert err2 < 0.1, f"[bn=False] max |kernel - reference| = {err2}"

    print("KERNEL_OK")
</pallas_src>

<mosaic_0001>
module attributes {stable_mosaic.version = 11 : i64} {
  func.func @_res_module_kernel(%arg0: memref<1x768xf32, #tpu.memory_space<vmem>>, %arg1: memref<8x1024xbf16, #tpu.memory_space<vmem>>, %arg2: memref<8x8xbf16, #tpu.memory_space<vmem>>, %arg3: memref<8x1xf32, #tpu.memory_space<vmem>>, %arg4: memref<8x72xbf16, #tpu.memory_space<vmem>>, %arg5: memref<8x1xf32, #tpu.memory_space<vmem>>, %arg6: memref<8x1xf32, #tpu.memory_space<vmem>>, %arg7: memref<8x72xbf16, #tpu.memory_space<vmem>>, %arg8: memref<8x1xf32, #tpu.memory_space<vmem>>, %arg9: memref<8x1xf32, #tpu.memory_space<vmem>>, %arg10: memref<8x8xbf16, #tpu.memory_space<vmem>>, %arg11: memref<8x1xf32, #tpu.memory_space<vmem>>, %arg12: memref<8x72xbf16, #tpu.memory_space<vmem>>, %arg13: memref<8x1xf32, #tpu.memory_space<vmem>>, %arg14: memref<8x1xf32, #tpu.memory_space<vmem>>, %arg15: memref<8x72xbf16, #tpu.memory_space<vmem>>, %arg16: memref<8x1xf32, #tpu.memory_space<vmem>>, %arg17: memref<8x1xf32, #tpu.memory_space<vmem>>, %arg18: memref<8x768xf32, #tpu.memory_space<vmem>>, %arg19: memref<8x1024xbf16, #tpu.memory_space<vmem>>, %arg20: memref<8x768xf32, #tpu.memory_space<vmem>>) attributes {dimension_semantics = [], scalar_prefetch = 0 : i64, scratch_operands = 2 : i64, tpu.core_type = #tpu.core_type<tc>} {
    %c0 = arith.constant 0 : index
    %c0_0 = arith.constant 0 : index
    %0 = vector.load %arg0[%c0, %c0_0] : memref<1x768xf32, #tpu.memory_space<vmem>>, vector<1x768xf32>
    %c0_1 = arith.constant 0 : index
    %c0_2 = arith.constant 0 : index
    %1 = vector.load %arg1[%c0_1, %c0_2] : memref<8x1024xbf16, #tpu.memory_space<vmem>>, vector<8x1024xbf16>
    %c0_3 = arith.constant 0 : index
    %c0_4 = arith.constant 0 : index
    %2 = vector.load %arg19[%c0_3, %c0_4] : memref<8x1024xbf16, #tpu.memory_space<vmem>>, vector<8x1024xbf16>
    tpu.vector_store %arg19[%c0_3, %c0_4], %1 {strides = array<i32>} : memref<8x1024xbf16, #tpu.memory_space<vmem>>, vector<8x1024xbf16>,
    %c0_5 = arith.constant 0 : index
    %c0_6 = arith.constant 0 : index
    %3 = vector.load %arg2[%c0_5, %c0_6] : memref<8x8xbf16, #tpu.memory_space<vmem>>, vector<8x8xbf16>
    %c0_7 = arith.constant 0 : index
    %c128 = arith.constant 128 : index
    %4 = vector.load %arg19[%c0_7, %c128] : memref<8x1024xbf16, #tpu.memory_space<vmem>>, vector<8x768xbf16>
    %cst = arith.constant dense<0.000000e+00> : vector<8x768xf32>
    %5 = tpu.matmul %3, %4, %cst {dimension_numbers = #tpu.dot_dimension_numbers<[1], [0], [0], [1], [0, 0, 1, 1], [], []>} : vector<8x8xbf16>, vector<8x768xbf16>, vector<8x768xf32> -> vector<8x768xf32>
    %c0_8 = arith.constant 0 : index
    %c0_9 = arith.constant 0 : index
    %6 = vector.load %arg3[%c0_8, %c0_9] : memref<8x1xf32, #tpu.memory_space<vmem>>, vector<8x1xf32>
    %7 = vector.broadcast %6 : vector<8x1xf32> to vector<8x768xf32>
    %8 = arith.addf %5, %7 : vector<8x768xf32>
    %9 = vector.broadcast %0 : vector<1x768xf32> to vector<8x768xf32>
    %10 = arith.mulf %8, %9 : vector<8x768xf32>
    %c0_10 = arith.constant 0 : index
    %c0_11 = arith.constant 0 : index
    %11 = vector.load %arg20[%c0_10, %c0_11] : memref<8x768xf32, #tpu.memory_space<vmem>>, vector<8x768xf32>
    tpu.vector_store %arg20[%c0_10, %c0_11], %10 {strides = array<i32>} : memref<8x768xf32, #tpu.memory_space<vmem>>, vector<8x768xf32>,
    %12 = arith.truncf %10 : vector<8x768xf32> to vector<8x768xbf16>
    %c0_12 = arith.constant 0 : index
    %c128_13 = arith.constant 128 : index
    %13 = vector.load %arg19[%c0_12, %c128_13] : memref<8x1024xbf16, #tpu.memory_space<vmem>>, vector<8x768xbf16>
    tpu.vector_store %arg19[%c0_12, %c128_13], %12 {strides = array<i32>} : memref<8x1024xbf16, #tpu.memory_space<vmem>>, vector<8x768xbf16>,
    %c0_14 = arith.constant 0 : index
    %c109 = arith.constant 109 : index
    %14 = vector.load %arg19[%c0_14, %c109] : memref<8x1024xbf16, #tpu.memory_space<vmem>>, vector<8x768xbf16>
    %c0_15 = arith.constant 0 : index
    %c110 = arith.constant 110 : index
    %15 = vector.load %arg19[%c0_15, %c110] : memref<8x1024xbf16, #tpu.memory_space<vmem>>, vector<8x768xbf16>
    %c0_16 = arith.constant 0 : index
    %c111 = arith.constant 111 : index
    %16 = vector.load %arg19[%c0_16, %c111] : memref<8x1024xbf16, #tpu.memory_space<vmem>>, vector<8x768xbf16>
    %c0_17 = arith.constant 0 : index
    %c127 = arith.constant 127 : index
    %17 = vector.load %arg19[%c0_17, %c127] : memref<8x1024xbf16, #tpu.memory_space<vmem>>, vector<8x768xbf16>
    %c0_18 = arith.constant 0 : index
    %c128_19 = arith.constant 128 : index
    %18 = vector.load %arg19[%c0_18, %c128_19] : memref<8x1024xbf16, #tpu.memory_space<vmem>>, vector<8x768xbf16>
    %c0_20 = arith.constant 0 : index
    %c129 = arith.constant 129 : index
    %19 = vector.load %arg19[%c0_20, %c129] : memref<8x1024xbf16, #tpu.memory_space<vmem>>, vector<8x768xbf16>
    %c0_21 = arith.constant 0 : index
    %c145 = arith.constant 145 : index
    %20 = vector.load %arg19[%c0_21, %c145] : memref<8x1024xbf16, #tpu.memory_space<vmem>>, vector<8x768xbf16>
    %c0_22 = arith.constant 0 : index
    %c146 = arith.constant 146 : index
    %21 = vector.load %arg19[%c0_22, %c146] : memref<8x1024xbf16, #tpu.memory_space<vmem>>, vector<8x768xbf16>
    %c0_23 = arith.constant 0 : index
    %c147 = arith.constant 147 : index
    %22 = vector.load %arg19[%c0_23, %c147] : memref<8x1024xbf16, #tpu.memory_space<vmem>>, vector<8x768xbf16>
    %23 = tpu.concatenate %14, %15, %16, %17, %18, %19, %20, %21, %22 in 0 : vector<8x768xbf16>, vector<8x768xbf16>, vector<8x768xbf16>, vector<8x768xbf16>, vector<8x768xbf16>, vector<8x768xbf16>, vector<8x768xbf16>, vector<8x768xbf16>, vector<8x768xbf16> -> vector<72x768xbf16>
    %c0_24 = arith.constant 0 : index
    %c0_25 = arith.constant 0 : index
    %24 = vector.load %arg4[%c0_24, %c0_25] : memref<8x72xbf16, #tpu.memory_space<vmem>>, vector<8x72xbf16>
    %cst_26 = arith.constant dense<0.000000e+00> : vector<8x768xf32>
    %25 = tpu.matmul %24, %23, %cst_26 {dimension_numbers = #tpu.dot_dimension_numbers<[1], [0], [0], [1], [0, 0, 1, 1], [], []>} : vector<8x72xbf16>, vector<72x768xbf16>, vector<8x768xf32> -> vector<8x768xf32>
    %26 = vector.broadcast %0 : vector<1x768xf32> to vector<8x768xf32>
    %27 = arith.mulf %25, %26 : vector<8x768xf32>
    %cst_27 = arith.constant dense<0.000000e+00> : vector<8xf32>
    %28 = vector.multi_reduction <add>, %27, %cst_27 [1] : vector<8x768xf32> to vector<8xf32>
    %29 = vector.shape_cast %28 : vector<8xf32> to vector<8x1xf32>
    %cst_28 = arith.constant 0.001953125 : f32
    %30 = vector.broadcast %cst_28 : f32 to vector<8x1xf32>
    %31 = arith.mulf %29, %30 : vector<8x1xf32>
    %32 = arith.mulf %27, %25 : vector<8x768xf32>
    %cst_29 = arith.constant dense<0.000000e+00> : vector<8xf32>
    %33 = vector.multi_reduction <add>, %32, %cst_29 [1] : vector<8x768xf32> to vector<8xf32>
    %34 = vector.shape_cast %33 : vector<8xf32> to vector<8x1xf32>
    %cst_30 = arith.constant 0.001953125 : f32
    %35 = vector.broadcast %cst_30 : f32 to vector<8x1xf32>
    %36 = arith.mulf %34, %35 : vector<8x1xf32>
    %c0_31 = arith.constant 0 : index
    %c0_32 = arith.constant 0 : index
    %37 = vector.load %arg5[%c0_31, %c0_32] : memref<8x1xf32, #tpu.memory_space<vmem>>, vector<8x1xf32>
    %38 = arith.mulf %31, %31 : vector<8x1xf32>
    %39 = arith.subf %36, %38 : vector<8x1xf32>
    %cst_33 = arith.constant 9.99999974E-6 : f32
    %40 = vector.broadcast %cst_33 : f32 to vector<8x1xf32>
    %41 = arith.addf %39, %40 : vector<8x1xf32>
    %42 = math.rsqrt %41 : vector<8x1xf32>
    %43 = arith.mulf %37, %42 : vector<8x1xf32>
    %c0_34 = arith.constant 0 : index
    %c0_35 = arith.constant 0 : index
    %44 = vector.load %arg6[%c0_34, %c0_35] : memref<8x1xf32, #tpu.memory_space<vmem>>, vector<8x1xf32>
    %45 = arith.mulf %31, %43 : vector<8x1xf32>
    %46 = arith.subf %44, %45 : vector<8x1xf32>
    %47 = vector.broadcast %43 : vector<8x1xf32> to vector<8x768xf32>
    %48 = arith.mulf %25, %47 : vector<8x768xf32>
    %49 = vector.broadcast %46 : vector<8x1xf32> to vector<8x768xf32>
    %50 = arith.addf %48, %49 : vector<8x768xf32>
    %cst_36 = arith.constant 0.00999999977 : f32
    %51 = vector.broadcast %cst_36 : f32 to vector<8x768xf32>
    %52 = arith.mulf %51, %50 : vector<8x768xf32>
    %53 = arith.maximumf %50, %52 : vector<8x768xf32>
    %54 = vector.broadcast %0 : vector<1x768xf32> to vector<8x768xf32>
    %55 = arith.mulf %53, %54 : vector<8x768xf32>
    %56 = arith.truncf %55 : vector<8x768xf32> to vector<8x768xbf16>
    %c0_37 = arith.constant 0 : index
    %c128_38 = arith.constant 128 : index
    %57 = vector.load %arg19[%c0_37, %c128_38] : memref<8x1024xbf16, #tpu.memory_space<vmem>>, vector<8x768xbf16>
    tpu.vector_store %arg19[%c0_37, %c128_38], %56 {strides = array<i32>} : memref<8x1024xbf16, #tpu.memory_space<vmem>>, vector<8x768xbf16>,
    %c0_39 = arith.constant 0 : index
    %c109_40 = arith.constant 109 : index
    %58 = vector.load %arg19[%c0_39, %c109_40] : memref<8x1024xbf16, #tpu.memory_space<vmem>>, vector<8x768xbf16>
    %c0_41 = arith.constant 0 : index
    %c110_42 = arith.constant 110 : index
    %59 = vector.load %arg19[%c0_41, %c110_42] : memref<8x1024xbf16, #tpu.memory_space<vmem>>, vector<8x768xbf16>
    %c0_43 = arith.constant 0 : index
    %c111_44 = arith.constant 111 : index
    %60 = vector.load %arg19[%c0_43, %c111_44] : memref<8x1024xbf16, #tpu.memory_space<vmem>>, vector<8x768xbf16>
    %c0_45 = arith.constant 0 : index
    %c127_46 = arith.constant 127 : index
    %61 = vector.load %arg19[%c0_45, %c127_46] : memref<8x1024xbf16, #tpu.memory_space<vmem>>, vector<8x768xbf16>
    %c0_47 = arith.constant 0 : index
    %c128_48 = arith.constant 128 : index
    %62 = vector.load %arg19[%c0_47, %c128_48] : memref<8x1024xbf16, #tpu.memory_space<vmem>>, vector<8x768xbf16>
    %c0_49 = arith.constant 0 : index
    %c129_50 = arith.constant 129 : index
    %63 = vector.load %arg19[%c0_49, %c129_50] : memref<8x1024xbf16, #tpu.memory_space<vmem>>, vector<8x768xbf16>
    %c0_51 = arith.constant 0 : index
    %c145_52 = arith.constant 145 : index
    %64 = vector.load %arg19[%c0_51, %c145_52] : memref<8x1024xbf16, #tpu.memory_space<vmem>>, vector<8x768xbf16>
    %c0_53 = arith.constant 0 : index
    %c146_54 = arith.constant 146 : index
    %65 = vector.load %arg19[%c0_53, %c146_54] : memref<8x1024xbf16, #tpu.memory_space<vmem>>, vector<8x768xbf16>
    %c0_55 = arith.constant 0 : index
    %c147_56 = arith.constant 147 : index
    %66 = vector.load %arg19[%c0_55, %c147_56] : memref<8x1024xbf16, #tpu.memory_space<vmem>>, vector<8x768xbf16>
    %67 = tpu.concatenate %58, %59, %60, %61, %62, %63, %64, %65, %66 in 0 : vector<8x768xbf16>, vector<8x768xbf16>, vector<8x768xbf16>, vector<8x768xbf16>, vector<8x768xbf16>, vector<8x768xbf16>, vector<8x768xbf16>, vector<8x768xbf16>, vector<8x768xbf16> -> vector<72x768xbf16>
    %c0_57 = arith.constant 0 : index
    %c0_58 = arith.constant 0 : index
    %68 = vector.load %arg7[%c0_57, %c0_58] : memref<8x72xbf16, #tpu.memory_space<vmem>>, vector<8x72xbf16>
    %cst_59 = arith.constant dense<0.000000e+00> : vector<8x768xf32>
    %69 = tpu.matmul %68, %67, %cst_59 {dimension_numbers = #tpu.dot_dimension_numbers<[1], [0], [0], [1], [0, 0, 1, 1], [], []>} : vector<8x72xbf16>, vector<72x768xbf16>, vector<8x768xf32> -> vector<8x768xf32>
    %70 = vector.broadcast %0 : vector<1x768xf32> to vector<8x768xf32>
    %71 = arith.mulf %69, %70 : vector<8x768xf32>
    %cst_60 = arith.constant dense<0.000000e+00> : vector<8xf32>
    %72 = vector.multi_reduction <add>, %71, %cst_60 [1] : vector<8x768xf32> to vector<8xf32>
    %73 = vector.shape_cast %72 : vector<8xf32> to vector<8x1xf32>
    %cst_61 = arith.constant 0.001953125 : f32
    %74 = vector.broadcast %cst_61 : f32 to vector<8x1xf32>
    %75 = arith.mulf %73, %74 : vector<8x1xf32>
    %76 = arith.mulf %71, %69 : vector<8x768xf32>
    %cst_62 = arith.constant dense<0.000000e+00> : vector<8xf32>
    %77 = vector.multi_reduction <add>, %76, %cst_62 [1] : vector<8x768xf32> to vector<8xf32>
    %78 = vector.shape_cast %77 : vector<8xf32> to vector<8x1xf32>
    %cst_63 = arith.constant 0.001953125 : f32
    %79 = vector.broadcast %cst_63 : f32 to vector<8x1xf32>
    %80 = arith.mulf %78, %79 : vector<8x1xf32>
    %c0_64 = arith.constant 0 : index
    %c0_65 = arith.constant 0 : index
    %81 = vector.load %arg8[%c0_64, %c0_65] : memref<8x1xf32, #tpu.memory_space<vmem>>, vector<8x1xf32>
    %82 = arith.mulf %75, %75 : vector<8x1xf32>
    %83 = arith.subf %80, %82 : vector<8x1xf32>
    %cst_66 = arith.constant 9.99999974E-6 : f32
    %84 = vector.broadcast %cst_66 : f32 to vector<8x1xf32>
    %85 = arith.addf %83, %84 : vector<8x1xf32>
    %86 = math.rsqrt %85 : vector<8x1xf32>
    %87 = arith.mulf %81, %86 : vector<8x1xf32>
    %c0_67 = arith.constant 0 : index
    %c0_68 = arith.constant 0 : index
    %88 = vector.load %arg9[%c0_67, %c0_68] : memref<8x1xf32, #tpu.memory_space<vmem>>, vector<8x1xf32>
    %89 = arith.mulf %75, %87 : vector<8x1xf32>
    %90 = arith.subf %88, %89 : vector<8x1xf32>
    %91 = vector.broadcast %87 : vector<8x1xf32> to vector<8x768xf32>
    %92 = arith.mulf %69, %91 : vector<8x768xf32>
    %93 = vector.broadcast %90 : vector<8x1xf32> to vector<8x768xf32>
    %94 = arith.addf %92, %93 : vector<8x768xf32>
    %c0_69 = arith.constant 0 : index
    %c0_70 = arith.constant 0 : index
    %95 = vector.load %arg20[%c0_69, %c0_70] : memref<8x768xf32, #tpu.memory_space<vmem>>, vector<8x768xf32>
    %96 = arith.addf %94, %95 : vector<8x768xf32>
    %cst_71 = arith.constant 0.00999999977 : f32
    %97 = vector.broadcast %cst_71 : f32 to vector<8x768xf32>
    %98 = arith.mulf %97, %96 : vector<8x768xf32>
    %99 = arith.maximumf %96, %98 : vector<8x768xf32>
    %100 = vector.broadcast %0 : vector<1x768xf32> to vector<8x768xf32>
    %101 = arith.mulf %99, %100 : vector<8x768xf32>
    %102 = arith.truncf %101 : vector<8x768xf32> to vector<8x768xbf16>
    %c0_72 = arith.constant 0 : index
    %c128_73 = arith.constant 128 : index
    %103 = vector.load %arg19[%c0_72, %c128_73] : memref<8x1024xbf16, #tpu.memory_space<vmem>>, vector<8x768xbf16>
    tpu.vector_store %arg19[%c0_72, %c128_73], %102 {strides = array<i32>} : memref<8x1024xbf16, #tpu.memory_space<vmem>>, vector<8x768xbf16>,
    %c0_74 = arith.constant 0 : index
    %c0_75 = arith.constant 0 : index
    %104 = vector.load %arg10[%c0_74, %c0_75] : memref<8x8xbf16, #tpu.memory_space<vmem>>, vector<8x8xbf16>
    %c0_76 = arith.constant 0 : index
    %c128_77 = arith.constant 128 : index
    %105 = vector.load %arg19[%c0_76, %c128_77] : memref<8x1024xbf16, #tpu.memory_space<vmem>>, vector<8x768xbf16>
    %cst_78 = arith.constant dense<0.000000e+00> : vector<8x768xf32>
    %106 = tpu.matmul %104, %105, %cst_78 {dimension_numbers = #tpu.dot_dimension_numbers<[1], [0], [0], [1], [0, 0, 1, 1], [], []>} : vector<8x8xbf16>, vector<8x768xbf16>, vector<8x768xf32> -> vector<8x768xf32>
    %c0_79 = arith.constant 0 : index
    %c0_80 = arith.constant 0 : index
    %107 = vector.load %arg11[%c0_79, %c0_80] : memref<8x1xf32, #tpu.memory_space<vmem>>, vector<8x1xf32>
    %108 = vector.broadcast %107 : vector<8x1xf32> to vector<8x768xf32>
    %109 = arith.addf %106, %108 : vector<8x768xf32>
    %110 = vector.broadcast %0 : vector<1x768xf32> to vector<8x768xf32>
    %111 = arith.mulf %109, %110 : vector<8x768xf32>
    %c0_81 = arith.constant 0 : index
    %c0_82 = arith.constant 0 : index
    %112 = vector.load %arg20[%c0_81, %c0_82] : memref<8x768xf32, #tpu.memory_space<vmem>>, vector<8x768xf32>
    tpu.vector_store %arg20[%c0_81, %c0_82], %111 {strides = array<i32>} : memref<8x768xf32, #tpu.memory_space<vmem>>, vector<8x768xf32>,
    %113 = arith.truncf %111 : vector<8x768xf32> to vector<8x768xbf16>
    %c0_83 = arith.constant 0 : index
    %c128_84 = arith.constant 128 : index
    %114 = vector.load %arg19[%c0_83, %c128_84] : memref<8x1024xbf16, #tpu.memory_space<vmem>>, vector<8x768xbf16>
    tpu.vector_store %arg19[%c0_83, %c128_84], %113 {strides = array<i32>} : memref<8x1024xbf16, #tpu.memory_space<vmem>>, vector<8x768xbf16>,
    %c0_85 = arith.constant 0 : index
    %c109_86 = arith.constant 109 : index
    %115 = vector.load %arg19[%c0_85, %c109_86] : memref<8x1024xbf16, #tpu.memory_space<vmem>>, vector<8x768xbf16>
    %c0_87 = arith.constant 0 : index
    %c110_88 = arith.constant 110 : index
    %116 = vector.load %arg19[%c0_87, %c110_88] : memref<8x1024xbf16, #tpu.memory_space<vmem>>, vector<8x768xbf16>
    %c0_89 = arith.constant 0 : index
    %c111_90 = arith.constant 111 : index
    %117 = vector.load %arg19[%c0_89, %c111_90] : memref<8x1024xbf16, #tpu.memory_space<vmem>>, vector<8x768xbf16>
    %c0_91 = arith.constant 0 : index
    %c127_92 = arith.constant 127 : index
    %118 = vector.load %arg19[%c0_91, %c127_92] : memref<8x1024xbf16, #tpu.memory_space<vmem>>, vector<8x768xbf16>
    %c0_93 = arith.constant 0 : index
    %c128_94 = arith.constant 128 : index
    %119 = vector.load %arg19[%c0_93, %c128_94] : memref<8x1024xbf16, #tpu.memory_space<vmem>>, vector<8x768xbf16>
    %c0_95 = arith.constant 0 : index
    %c129_96 = arith.constant 129 : index
    %120 = vector.load %arg19[%c0_95, %c129_96] : memref<8x1024xbf16, #tpu.memory_space<vmem>>, vector<8x768xbf16>
    %c0_97 = arith.constant 0 : index
    %c145_98 = arith.constant 145 : index
    %121 = vector.load %arg19[%c0_97, %c145_98] : memref<8x1024xbf16, #tpu.memory_space<vmem>>, vector<8x768xbf16>
    %c0_99 = arith.constant 0 : index
    %c146_100 = arith.constant 146 : index
    %122 = vector.load %arg19[%c0_99, %c146_100] : memref<8x1024xbf16, #tpu.memory_space<vmem>>, vector<8x768xbf16>
    %c0_101 = arith.constant 0 : index
    %c147_102 = arith.constant 147 : index
    %123 = vector.load %arg19[%c0_101, %c147_102] : memref<8x1024xbf16, #tpu.memory_space<vmem>>, vector<8x768xbf16>
    %124 = tpu.concatenate %115, %116, %117, %118, %119, %120, %121, %122, %123 in 0 : vector<8x768xbf16>, vector<8x768xbf16>, vector<8x768xbf16>, vector<8x768xbf16>, vector<8x768xbf16>, vector<8x768xbf16>, vector<8x768xbf16>, vector<8x768xbf16>, vector<8x768xbf16> -> vector<72x768xbf16>
    %c0_103 = arith.constant 0 : index
    %c0_104 = arith.constant 0 : index
    %125 = vector.load %arg12[%c0_103, %c0_104] : memref<8x72xbf16, #tpu.memory_space<vmem>>, vector<8x72xbf16>
    %cst_105 = arith.constant dense<0.000000e+00> : vector<8x768xf32>
    %126 = tpu.matmul %125, %124, %cst_105 {dimension_numbers = #tpu.dot_dimension_numbers<[1], [0], [0], [1], [0, 0, 1, 1], [], []>} : vector<8x72xbf16>, vector<72x768xbf16>, vector<8x768xf32> -> vector<8x768xf32>
    %127 = vector.broadcast %0 : vector<1x768xf32> to vector<8x768xf32>
    %128 = arith.mulf %126, %127 : vector<8x768xf32>
    %cst_106 = arith.constant dense<0.000000e+00> : vector<8xf32>
    %129 = vector.multi_reduction <add>, %128, %cst_106 [1] : vector<8x768xf32> to vector<8xf32>
    %130 = vector.shape_cast %129 : vector<8xf32> to vector<8x1xf32>
    %cst_107 = arith.constant 0.001953125 : f32
    %131 = vector.broadcast %cst_107 : f32 to vector<8x1xf32>
    %132 = arith.mulf %130, %131 : vector<8x1xf32>
    %133 = arith.mulf %128, %126 : vector<8x768xf32>
    %cst_108 = arith.constant dense<0.000000e+00> : vector<8xf32>
    %134 = vector.multi_reduction <add>, %133, %cst_108 [1] : vector<8x768xf32> to vector<8xf32>
    %135 = vector.shape_cast %134 : vector<8xf32> to vector<8x1xf32>
    %cst_109 = arith.constant 0.001953125 : f32
    %136 = vector.broadcast %cst_109 : f32 to vector<8x1xf32>
    %137 = arith.mulf %135, %136 : vector<8x1xf32>
    %c0_110 = arith.constant 0 : index
    %c0_111 = arith.constant 0 : index
    %138 = vector.load %arg13[%c0_110, %c0_111] : memref<8x1xf32, #tpu.memory_space<vmem>>, vector<8x1xf32>
    %139 = arith.mulf %132, %132 : vector<8x1xf32>
    %140 = arith.subf %137, %139 : vector<8x1xf32>
    %cst_112 = arith.constant 9.99999974E-6 : f32
    %141 = vector.broadcast %cst_112 : f32 to vector<8x1xf32>
    %142 = arith.addf %140, %141 : vector<8x1xf32>
    %143 = math.rsqrt %142 : vector<8x1xf32>
    %144 = arith.mulf %138, %143 : vector<8x1xf32>
    %c0_113 = arith.constant 0 : index
    %c0_114 = arith.constant 0 : index
    %145 = vector.load %arg14[%c0_113, %c0_114] : memref<8x1xf32, #tpu.memory_space<vmem>>, vector<8x1xf32>
    %146 = arith.mulf %132, %144 : vector<8x1xf32>
    %147 = arith.subf %145, %146 : vector<8x1xf32>
    %148 = vector.broadcast %144 : vector<8x1xf32> to vector<8x768xf32>
    %149 = arith.mulf %126, %148 : vector<8x768xf32>
    %150 = vector.broadcast %147 : vector<8x1xf32> to vector<8x768xf32>
    %151 = arith.addf %149, %150 : vector<8x768xf32>
    %cst_115 = arith.constant 0.00999999977 : f32
    %152 = vector.broadcast %cst_115 : f32 to vector<8x768xf32>
    %153 = arith.mulf %152, %151 : vector<8x768xf32>
    %154 = arith.maximumf %151, %153 : vector<8x768xf32>
    %155 = vector.broadcast %0 : vector<1x768xf32> to vector<8x768xf32>
    %156 = arith.mulf %154, %155 : vector<8x768xf32>
    %157 = arith.truncf %156 : vector<8x768xf32> to vector<8x768xbf16>
    %c0_116 = arith.constant 0 : index
    %c128_117 = arith.constant 128 : index
    %158 = vector.load %arg19[%c0_116, %c128_117] : memref<8x1024xbf16, #tpu.memory_space<vmem>>, vector<8x768xbf16>
    tpu.vector_store %arg19[%c0_116, %c128_117], %157 {strides = array<i32>} : memref<8x1024xbf16, #tpu.memory_space<vmem>>, vector<8x768xbf16>,
    %c0_118 = arith.constant 0 : index
    %c109_119 = arith.constant 109 : index
    %159 = vector.load %arg19[%c0_118, %c109_119] : memref<8x1024xbf16, #tpu.memory_space<vmem>>, vector<8x768xbf16>
    %c0_120 = arith.constant 0 : index
    %c110_121 = arith.constant 110 : index
    %160 = vector.load %arg19[%c0_120, %c110_121] : memref<8x1024xbf16, #tpu.memory_space<vmem>>, vector<8x768xbf16>
    %c0_122 = arith.constant 0 : index
    %c111_123 = arith.constant 111 : index
    %161 = vector.load %arg19[%c0_122, %c111_123] : memref<8x1024xbf16, #tpu.memory_space<vmem>>, vector<8x768xbf16>
    %c0_124 = arith.constant 0 : index
    %c127_125 = arith.constant 127 : index
    %162 = vector.load %arg19[%c0_124, %c127_125] : memref<8x1024xbf16, #tpu.memory_space<vmem>>, vector<8x768xbf16>
    %c0_126 = arith.constant 0 : index
    %c128_127 = arith.constant 128 : index
    %163 = vector.load %arg19[%c0_126, %c128_127] : memref<8x1024xbf16, #tpu.memory_space<vmem>>, vector<8x768xbf16>
    %c0_128 = arith.constant 0 : index
    %c129_129 = arith.constant 129 : index
    %164 = vector.load %arg19[%c0_128, %c129_129] : memref<8x1024xbf16, #tpu.memory_space<vmem>>, vector<8x768xbf16>
    %c0_130 = arith.constant 0 : index
    %c145_131 = arith.constant 145 : index
    %165 = vector.load %arg19[%c0_130, %c145_131] : memref<8x1024xbf16, #tpu.memory_space<vmem>>, vector<8x768xbf16>
    %c0_132 = arith.constant 0 : index
    %c146_133 = arith.constant 146 : index
    %166 = vector.load %arg19[%c0_132, %c146_133] : memref<8x1024xbf16, #tpu.memory_space<vmem>>, vector<8x768xbf16>
    %c0_134 = arith.constant 0 : index
    %c147_135 = arith.constant 147 : index
    %167 = vector.load %arg19[%c0_134, %c147_135] : memref<8x1024xbf16, #tpu.memory_space<vmem>>, vector<8x768xbf16>
    %168 = tpu.concatenate %159, %160, %161, %162, %163, %164, %165, %166, %167 in 0 : vector<8x768xbf16>, vector<8x768xbf16>, vector<8x768xbf16>, vector<8x768xbf16>, vector<8x768xbf16>, vector<8x768xbf16>, vector<8x768xbf16>, vector<8x768xbf16>, vector<8x768xbf16> -> vector<72x768xbf16>
    %c0_136 = arith.constant 0 : index
    %c0_137 = arith.constant 0 : index
    %169 = vector.load %arg15[%c0_136, %c0_137] : memref<8x72xbf16, #tpu.memory_space<vmem>>, vector<8x72xbf16>
    %cst_138 = arith.constant dense<0.000000e+00> : vector<8x768xf32>
    %170 = tpu.matmul %169, %168, %cst_138 {dimension_numbers = #tpu.dot_dimension_numbers<[1], [0], [0], [1], [0, 0, 1, 1], [], []>} : vector<8x72xbf16>, vector<72x768xbf16>, vector<8x768xf32> -> vector<8x768xf32>
    %171 = vector.broadcast %0 : vector<1x768xf32> to vector<8x768xf32>
    %172 = arith.mulf %170, %171 : vector<8x768xf32>
    %cst_139 = arith.constant dense<0.000000e+00> : vector<8xf32>
    %173 = vector.multi_reduction <add>, %172, %cst_139 [1] : vector<8x768xf32> to vector<8xf32>
    %174 = vector.shape_cast %173 : vector<8xf32> to vector<8x1xf32>
    %cst_140 = arith.constant 0.001953125 : f32
    %175 = vector.broadcast %cst_140 : f32 to vector<8x1xf32>
    %176 = arith.mulf %174, %175 : vector<8x1xf32>
    %177 = arith.mulf %172, %170 : vector<8x768xf32>
    %cst_141 = arith.constant dense<0.000000e+00> : vector<8xf32>
    %178 = vector.multi_reduction <add>, %177, %cst_141 [1] : vector<8x768xf32> to vector<8xf32>
    %179 = vector.shape_cast %178 : vector<8xf32> to vector<8x1xf32>
    %cst_142 = arith.constant 0.001953125 : f32
    %180 = vector.broadcast %cst_142 : f32 to vector<8x1xf32>
    %181 = arith.mulf %179, %180 : vector<8x1xf32>
    %c0_143 = arith.constant 0 : index
    %c0_144 = arith.constant 0 : index
    %182 = vector.load %arg16[%c0_143, %c0_144] : memref<8x1xf32, #tpu.memory_space<vmem>>, vector<8x1xf32>
    %183 = arith.mulf %176, %176 : vector<8x1xf32>
    %184 = arith.subf %181, %183 : vector<8x1xf32>
    %cst_145 = arith.constant 9.99999974E-6 : f32
    %185 = vector.broadcast %cst_145 : f32 to vector<8x1xf32>
    %186 = arith.addf %184, %185 : vector<8x1xf32>
    %187 = math.rsqrt %186 : vector<8x1xf32>
    %188 = arith.mulf %182, %187 : vector<8x1xf32>
    %c0_146 = arith.constant 0 : index
    %c0_147 = arith.constant 0 : index
    %189 = vector.load %arg17[%c0_146, %c0_147] : memref<8x1xf32, #tpu.memory_space<vmem>>, vector<8x1xf32>
    %190 = arith.mulf %176, %188 : vector<8x1xf32>
    %191 = arith.subf %189, %190 : vector<8x1xf32>
    %192 = vector.broadcast %188 : vector<8x1xf32> to vector<8x768xf32>
    %193 = arith.mulf %170, %192 : vector<8x768xf32>
    %194 = vector.broadcast %191 : vector<8x1xf32> to vector<8x768xf32>
    %195 = arith.addf %193, %194 : vector<8x768xf32>
    %c0_148 = arith.constant 0 : index
    %c0_149 = arith.constant 0 : index
    %196 = vector.load %arg20[%c0_148, %c0_149] : memref<8x768xf32, #tpu.memory_space<vmem>>, vector<8x768xf32>
    %197 = arith.addf %195, %196 : vector<8x768xf32>
    %cst_150 = arith.constant 0.00999999977 : f32
    %198 = vector.broadcast %cst_150 : f32 to vector<8x768xf32>
    %199 = arith.mulf %198, %197 : vector<8x768xf32>
    %200 = arith.maximumf %197, %199 : vector<8x768xf32>
    %201 = vector.broadcast %0 : vector<1x768xf32> to vector<8x768xf32>
    %202 = arith.mulf %200, %201 : vector<8x768xf32>
    %c0_151 = arith.constant 0 : index
    %c0_152 = arith.constant 0 : index
    %203 = vector.load %arg18[%c0_151, %c0_152] : memref<8x768xf32, #tpu.memory_space<vmem>>, vector<8x768xf32>
    tpu.vector_store %arg18[%c0_151, %c0_152], %202 {strides = array<i32>} : memref<8x768xf32, #tpu.memory_space<vmem>>, vector<8x768xf32>,
    return
  }
}

</mosaic_0001>

<llo_original>
// kernel: res_module_forward.1
$region0: #{res_module_forward.1}
  #allocation0 [shape = 'u32[]', space=smem, size = 0x4, offset = 0x4, fixed_abs, tag = 'smem constant byte address 0x4 - core index']
  #allocation1 [shape = 'u32[72,128]{1,0:T(1,128)}', space=vmem, size = 0x9000, scoped, tag = 'internal scratch']
  #allocation2 [shape = 'bf16[8,1024]{1,0:T(8,128)(2,1)}', space=vmem, size = 0x4000, scoped, tag = 'scratch operand']
  #allocation3 [shape = 'f32[8,768]{1,0:T(8,128)}', space=vmem, size = 0x6000, scoped, tag = 'scratch operand']
  %s0 = inlined_call_operand.vmem [shape: f32[1,768], index: 0, kind: input, shape index: {}]
  %s1 = inlined_call_operand.vmem [shape: bf16[8,1024], index: 1, kind: input, shape index: {}]
  %s2 = inlined_call_operand.vmem [shape: bf16[8,8], index: 2, kind: input, shape index: {}]
  %s3 = inlined_call_operand.vmem [shape: f32[8,1], index: 3, kind: input, shape index: {}]
  %s4 = inlined_call_operand.vmem [shape: bf16[8,72], index: 4, kind: input, shape index: {}]
  %s5 = inlined_call_operand.vmem [shape: f32[8,1], index: 5, kind: input, shape index: {}]
  %s6 = inlined_call_operand.vmem [shape: f32[8,1], index: 6, kind: input, shape index: {}]
  %s7 = inlined_call_operand.vmem [shape: bf16[8,72], index: 7, kind: input, shape index: {}]
  %s8 = inlined_call_operand.vmem [shape: f32[8,1], index: 8, kind: input, shape index: {}]
  %s9 = inlined_call_operand.vmem [shape: f32[8,1], index: 9, kind: input, shape index: {}]
  %s10 = inlined_call_operand.vmem [shape: bf16[8,8], index: 10, kind: input, shape index: {}]
  %s11 = inlined_call_operand.vmem [shape: f32[8,1], index: 11, kind: input, shape index: {}]
  %s12 = inlined_call_operand.vmem [shape: bf16[8,72], index: 12, kind: input, shape index: {}]
  %s13 = inlined_call_operand.vmem [shape: f32[8,1], index: 13, kind: input, shape index: {}]
  %s14 = inlined_call_operand.vmem [shape: f32[8,1], index: 14, kind: input, shape index: {}]
  %s15 = inlined_call_operand.vmem [shape: bf16[8,72], index: 15, kind: input, shape index: {}]
  %s16 = inlined_call_operand.vmem [shape: f32[8,1], index: 16, kind: input, shape index: {}]
  %s17 = inlined_call_operand.vmem [shape: f32[8,1], index: 17, kind: input, shape index: {}]
  %s18 = inlined_call_operand.vmem [shape: f32[8,768], index: 18, kind: output, shape index: {}]
  %s19 = sld [smem:[#allocation0]]
  $region82: #{res_module_forward.1} parent=0
    _
  %s21 = ssub.s32 1, %s19
  %s22 = scalar_select 0, %s21, %s19
  // Predicated region
  $region2: #{res_module_forward.1} parent=0 // pred_check
    _
  $region3: #{res_module_forward.1} parent=0 // pred_check_branch
    %24 = sbr.rel (0) target = $region5
  $region4: #{res_module_forward.1} parent=0 // pred_region
    _
  $region5: #{res_module_forward.1} parent=0 // pred_fallthru
    _
  // Predicated region
  $region6: #{res_module_forward.1} parent=0 // pred_check
    _
  $region7: #{res_module_forward.1} parent=0 // pred_check_branch
    %26 = sbr.rel (0) target = $region9
  $region8: #{res_module_forward.1} parent=0 // pred_region
    _
  $region9: #{res_module_forward.1} parent=0 // pred_fallthru
    _
  // Predicated region
  $region10: #{res_module_forward.1} parent=0 // pred_check
    _
  $region11: #{res_module_forward.1} parent=0 // pred_check_branch
    %28 = sbr.rel (0) target = $region13
  $region12: #{res_module_forward.1} parent=0 // pred_region
    _
  $region13: #{res_module_forward.1} parent=0 // pred_fallthru
    _
  // Predicated region
  $region14: #{res_module_forward.1} parent=0 // pred_check
    _
  $region15: #{res_module_forward.1} parent=0 // pred_check_branch
    %30 = sbr.rel (0) target = $region17
  $region16: #{res_module_forward.1} parent=0 // pred_region
    _
  $region17: #{res_module_forward.1} parent=0 // pred_fallthru
    _
  // Predicated region
  $region18: #{res_module_forward.1} parent=0 // pred_check
    _
  $region19: #{res_module_forward.1} parent=0 // pred_check_branch
    %32 = sbr.rel (0) target = $region21
  $region20: #{res_module_forward.1} parent=0 // pred_region
    _
  $region21: #{res_module_forward.1} parent=0 // pred_fallthru
    _
  // Predicated region
  $region22: #{res_module_forward.1} parent=0 // pred_check
    _
  $region23: #{res_module_forward.1} parent=0 // pred_check_branch
    %34 = sbr.rel (0) target = $region25
  $region24: #{res_module_forward.1} parent=0 // pred_region
    _
  $region25: #{res_module_forward.1} parent=0 // pred_fallthru
    _
  // Predicated region
  $region26: #{res_module_forward.1} parent=0 // pred_check
    _
  $region27: #{res_module_forward.1} parent=0 // pred_check_branch
    %36 = sbr.rel (0) target = $region29
  $region28: #{res_module_forward.1} parent=0 // pred_region
    _
  $region29: #{res_module_forward.1} parent=0 // pred_fallthru
    _
  // Predicated region
  $region30: #{res_module_forward.1} parent=0 // pred_check
    _
  $region31: #{res_module_forward.1} parent=0 // pred_check_branch
    %38 = sbr.rel (0) target = $region33
  $region32: #{res_module_forward.1} parent=0 // pred_region
    _
  $region33: #{res_module_forward.1} parent=0 // pred_fallthru
    _
  // Predicated region
  $region34: #{res_module_forward.1} parent=0 // pred_check
    _
  $region35: #{res_module_forward.1} parent=0 // pred_check_branch
    %40 = sbr.rel (0) target = $region37
  $region36: #{res_module_forward.1} parent=0 // pred_region
    _
  $region37: #{res_module_forward.1} parent=0 // pred_fallthru
    _
  // Predicated region
  $region38: #{res_module_forward.1} parent=0 // pred_check
    _
  $region39: #{res_module_forward.1} parent=0 // pred_check_branch
    %42 = sbr.rel (0) target = $region41
  $region40: #{res_module_forward.1} parent=0 // pred_region
    _
  $region41: #{res_module_forward.1} parent=0 // pred_fallthru
    _
  // Predicated region
  $region42: #{res_module_forward.1} parent=0 // pred_check
    _
  $region43: #{res_module_forward.1} parent=0 // pred_check_branch
    %44 = sbr.rel (0) target = $region45
  $region44: #{res_module_forward.1} parent=0 // pred_region
    _
  $region45: #{res_module_forward.1} parent=0 // pred_fallthru
    _
  // Predicated region
  $region46: #{res_module_forward.1} parent=0 // pred_check
    _
  $region47: #{res_module_forward.1} parent=0 // pred_check_branch
    %46 = sbr.rel (0) target = $region49
  $region48: #{res_module_forward.1} parent=0 // pred_region
    _
  $region49: #{res_module_forward.1} parent=0 // pred_fallthru
    _
  // Predicated region
  $region50: #{res_module_forward.1} parent=0 // pred_check
    _
  $region51: #{res_module_forward.1} parent=0 // pred_check_branch
    %48 = sbr.rel (0) target = $region53
  $region52: #{res_module_forward.1} parent=0 // pred_region
    _
  $region53: #{res_module_forward.1} parent=0 // pred_fallthru
    _
  // Predicated region
  $region54: #{res_module_forward.1} parent=0 // pred_check
    _
  $region55: #{res_module_forward.1} parent=0 // pred_check_branch
    %50 = sbr.rel (0) target = $region57
  $region56: #{res_module_forward.1} parent=0 // pred_region
    _
  $region57: #{res_module_forward.1} parent=0 // pred_fallthru
    _
  // Predicated region
  $region58: #{res_module_forward.1} parent=0 // pred_check
    _
  $region59: #{res_module_forward.1} parent=0 // pred_check_branch
    %52 = sbr.rel (0) target = $region61
  $region60: #{res_module_forward.1} parent=0 // pred_region
    _
  $region61: #{res_module_forward.1} parent=0 // pred_fallthru
    _
  // Predicated region
  $region62: #{res_module_forward.1} parent=0 // pred_check
    _
  $region63: #{res_module_forward.1} parent=0 // pred_check_branch
    %54 = sbr.rel (0) target = $region65
  $region64: #{res_module_forward.1} parent=0 // pred_region
    _
  $region65: #{res_module_forward.1} parent=0 // pred_fallthru
    _
  // Predicated region
  $region66: #{res_module_forward.1} parent=0 // pred_check
    _
  $region67: #{res_module_forward.1} parent=0 // pred_check_branch
    %56 = sbr.rel (0) target = $region69
  $region68: #{res_module_forward.1} parent=0 // pred_region
    _
  $region69: #{res_module_forward.1} parent=0 // pred_fallthru
    _
  // Predicated region
  $region70: #{res_module_forward.1} parent=0 // pred_check
    _
  $region71: #{res_module_forward.1} parent=0 // pred_check_branch
    %58 = sbr.rel (0) target = $region73
  $region72: #{res_module_forward.1} parent=0 // pred_region
    _
  $region73: #{res_module_forward.1} parent=0 // pred_fallthru
    _
  %v60 = vld [vmem:[%s0] sm:$0x3f]
  %v61 = vld [vmem:[%s1] sm:$0xff]
  %v62 = vld [vmem:[%s1 + $0x8] sm:$0xff]
  %v63 = vld [vmem:[%s1 + $0x10] sm:$0xff]
  %v64 = vld [vmem:[%s1 + $0x18] sm:$0xff]
  %65 = vst [vmem:[#allocation2] sm:$0xff] %v61
  %66 = vst [vmem:[#allocation2 + $0x8] sm:$0xff] %v62
  %67 = vst [vmem:[#allocation2 + $0x10] sm:$0xff] %v63
  %68 = vst [vmem:[#allocation2 + $0x18] sm:$0xff] %v64
  %v69 = vld [vmem:[%s2] sm:$0xf]
  %v70 = vld [vmem:[#allocation2 + $0x4] sm:$0xff]
  %v71 = vld [vmem:[#allocation2 + $0xc] sm:$0xff]
  %v72 = vld [vmem:[#allocation2 + $0x14] sm:$0xff]
  %v73 = vld [vmem:[%s3] sm:$0xff]
  %75 = vset.pattern.permute.xlu0 0
  %76 = vperm.xlu0 %75, %v73
  %v77 = vpop.permute.xlu0 %76
  %v82 = vunpack.c.l.b16 %v70
  %v83 = vunpack.c.h.b16 %v70
  %v84 = vunpack.c.l.b16 %v71
  %v85 = vunpack.c.h.b16 %v71
  %v86 = vunpack.c.l.b16 %v72
  %v87 = vunpack.c.h.b16 %v72
  %v88 = vpack.c.b16 %v82, %v82
  %v89 = vpack.c.b16 %v83, %v83
  %v90 = vpack.c.b16 %v84, %v84
  %v91 = vpack.c.b16 %v85, %v85
  %v92 = vpack.c.b16 %v86, %v86
  %v93 = vpack.c.b16 %v87, %v87
  %vm94 = vcmask 64512
  %v96 = vsel %vm94, %v69, 0
  %vm98 = vcmask 1043456
  %v100 = vsel %vm98, %v88, 0
  %v103 = vsel %vm98, %v89, 0
  %v106 = vsel %vm98, %v90, 0
  %v109 = vsel %vm98, %v91, 0
  %v112 = vsel %vm98, %v92, 0
  %v115 = vsel %vm98, %v93, 0
  %117 = vmatpush.bf16.msra.mxu0 0
  %118 = vmatpush.bf16.msra.mxu0 0
  %119 = vmatpush.bf16.msra.mxu0 0
  %120 = vmatpush.bf16.msra.mxu0 0
  %121 = vmatpush.bf16.msra.mxu0 0
  %122 = vmatpush.bf16.msra.mxu0 0
  %123 = vmatpush.bf16.msra.mxu0 0
  %124 = vmatpush.bf16.msra.mxu0 %v100
  %125 = vmatmul.bf16.gmra.mxu0 %v96
  %v126 = vpop.f32.mrf.mxu0
  %v127 = vadd.f32 %v77, %v126
  %v128 = vpop.f32.mrf.mxu0
  %129 = vdwg.mxu0
  %130 = vmatpush.bf16.msra.mxu0 0
  %131 = vmatpush.bf16.msra.mxu0 0
  %132 = vmatpush.bf16.msra.mxu0 0
  %133 = vmatpush.bf16.msra.mxu0 0
  %134 = vmatpush.bf16.msra.mxu0 0
  %135 = vmatpush.bf16.msra.mxu0 0
  %136 = vmatpush.bf16.msra.mxu0 0
  %137 = vmatpush.bf16.msra.mxu0 %v103
  %138 = vmatmul.bf16.gmra.mxu0 %v96
  %v139 = vpop.f32.mrf.mxu0
  %v140 = vadd.f32 %v77, %v139
  %v141 = vpop.f32.mrf.mxu0
  %142 = vdwg.mxu0
  %143 = vmatpush.bf16.msra.mxu0 0
  %144 = vmatpush.bf16.msra.mxu0 0
  %145 = vmatpush.bf16.msra.mxu0 0
  %146 = vmatpush.bf16.msra.mxu0 0
  %147 = vmatpush.bf16.msra.mxu0 0
  %148 = vmatpush.bf16.msra.mxu0 0
  %149 = vmatpush.bf16.msra.mxu0 0
  %150 = vmatpush.bf16.msra.mxu0 %v106
  %151 = vmatmul.bf16.gmra.mxu0 %v96
  %v152 = vpop.f32.mrf.mxu0
  %v153 = vadd.f32 %v77, %v152
  %v154 = vpop.f32.mrf.mxu0
  %155 = vdwg.mxu0
  %156 = vmatpush.bf16.msra.mxu0 0
  %157 = vmatpush.bf16.msra.mxu0 0
  %158 = vmatpush.bf16.msra.mxu0 0
  %159 = vmatpush.bf16.msra.mxu0 0
  %160 = vmatpush.bf16.msra.mxu0 0
  %161 = vmatpush.bf16.msra.mxu0 0
  %162 = vmatpush.bf16.msra.mxu0 0
  %163 = vmatpush.bf16.msra.mxu0 %v109
  %164 = vmatmul.bf16.gmra.mxu0 %v96
  %v165 = vpop.f32.mrf.mxu0
  %v166 = vadd.f32 %v77, %v165
  %v167 = vpop.f32.mrf.mxu0
  %168 = vdwg.mxu0
  %169 = vmatpush.bf16.msra.mxu0 0
  %170 = vmatpush.bf16.msra.mxu0 0
  %171 = vmatpush.bf16.msra.mxu0 0
  %172 = vmatpush.bf16.msra.mxu0 0
  %173 = vmatpush.bf16.msra.mxu0 0
  %174 = vmatpush.bf16.msra.mxu0 0
  %175 = vmatpush.bf16.msra.mxu0 0
  %176 = vmatpush.bf16.msra.mxu0 %v112
  %177 = vmatmul.bf16.gmra.mxu0 %v96
  %v178 = vpop.f32.mrf.mxu0
  %v179 = vadd.f32 %v77, %v178
  %v180 = vpop.f32.mrf.mxu0
  %181 = vdwg.mxu0
  %182 = vmatpush.bf16.msra.mxu0 0
  %183 = vmatpush.bf16.msra.mxu0 0
  %184 = vmatpush.bf16.msra.mxu0 0
  %185 = vmatpush.bf16.msra.mxu0 0
  %186 = vmatpush.bf16.msra.mxu0 0
  %187 = vmatpush.bf16.msra.mxu0 0
  %188 = vmatpush.bf16.msra.mxu0 0
  %189 = vmatpush.bf16.msra.mxu0 %v115
  %190 = vmatmul.bf16.gmra.mxu0 %v96
  %v191 = vpop.f32.mrf.mxu0
  %v192 = vadd.f32 %v77, %v191
  %v193 = vpop.f32.mrf.mxu0
  %194 = vdwg.mxu0
  %v196 = vperm.slane %v60, 0
  %v197 = vperm.slane %v60, 1
  %v198 = vperm.slane %v60, 2
  %v199 = vperm.slane %v60, 3
  %v200 = vperm.slane %v60, 4
  %v201 = vperm.slane %v60, 5
  %v208 = vmul.f32 %v127, %v196
  %v209 = vmul.f32 %v140, %v197
  %v210 = vmul.f32 %v153, %v198
  %v211 = vmul.f32 %v166, %v199
  %v212 = vmul.f32 %v179, %v200
  %v213 = vmul.f32 %v192, %v201
  %214 = vst [vmem:[#allocation3] sm:$0xff] %v208
  %215 = vst [vmem:[#allocation3 + $0x8] sm:$0xff] %v209
  %216 = vst [vmem:[#allocation3 + $0x10] sm:$0xff] %v210
  %217 = vst [vmem:[#allocation3 + $0x18] sm:$0xff] %v211
  %218 = vst [vmem:[#allocation3 + $0x20] sm:$0xff] %v212
  %219 = vst [vmem:[#allocation3 + $0x28] sm:$0xff] %v213
  %v220 = vpack.c.bf16 %v209, %v208
  %v221 = vpack.c.bf16 %v211, %v210
  %v222 = vpack.c.bf16 %v213, %v212
  %223 = vst [vmem:[#allocation2 + $0x4] sm:$0xff] %v220
  %224 = vst [vmem:[#allocation2 + $0xc] sm:$0xff] %v221
  %225 = vst [vmem:[#allocation2 + $0x14] sm:$0xff] %v222
  %v226 = vld [vmem:[#allocation2] sm:$0xff]
  %v227 = vld [vmem:[#allocation2 + $0x8] sm:$0xff]
  %v228 = vld [vmem:[#allocation2 + $0x10] sm:$0xff]
  %v229 = vld [vmem:[#allocation2 + $0x18] sm:$0xf]
  %v230 = vld [vmem:[#allocation2 + $0x4] sm:$0xff]
  %v231 = vld [vmem:[#allocation2 + $0xc] sm:$0xff]
  %v232 = vld [vmem:[#allocation2 + $0x14] sm:$0xff]
  %v233 = vld [vmem:[#allocation2 + $0x4] sm:$0xff]
  %v234 = vld [vmem:[#allocation2 + $0xc] sm:$0xff]
  %v235 = vld [vmem:[#allocation2 + $0x14] sm:$0xff]
  %v236 = vld [vmem:[#allocation2 + $0x1c] sm:$0xf]
  %v241 = vunpack.c.l.b16 %v226
  %v242 = vunpack.c.h.b16 %v226
  %v243 = vunpack.c.l.b16 %v227
  %v244 = vunpack.c.h.b16 %v227
  %v245 = vunpack.c.l.b16 %v228
  %v246 = vunpack.c.h.b16 %v228
  %v247 = vunpack.c.l.b16 %v229
  %v248 = vpack.c.b16 %v241, %v241
  %v249 = vpack.c.b16 %v242, %v242
  %v250 = vpack.c.b16 %v243, %v243
  %v251 = vpack.c.b16 %v244, %v244
  %v252 = vpack.c.b16 %v245, %v245
  %v253 = vpack.c.b16 %v246, %v246
  %v254 = vpack.c.b16 %v247, %v247
  %255 = vrot.lane.b32.xlu0 %v248, 127
  %v256 = vpop.permute.xlu0 %255
  %257 = vrot.lane.b32.xlu0 %v249, 127
  %v258 = vpop.permute.xlu0 %257
  %259 = vrot.lane.b32.xlu0 %v250, 127
  %v260 = vpop.permute.xlu0 %259
  %261 = vrot.lane.b32.xlu0 %v251, 127
  %v262 = vpop.permute.xlu0 %261
  %263 = vrot.lane.b32.xlu0 %v252, 127
  %v264 = vpop.permute.xlu0 %263
  %265 = vrot.lane.b32.xlu0 %v253, 127
  %v266 = vpop.permute.xlu0 %265
  %267 = vrot.lane.b32.xlu0 %v254, 127
  %v268 = vpop.permute.xlu0 %267
  %vm269 = vcmask 1039360
  %v270 = vsel %vm269, %v256, %v258
  %v271 = vsel %vm269, %v258, %v260
  %v272 = vsel %vm269, %v260, %v262
  %v273 = vsel %vm269, %v262, %v264
  %v274 = vsel %vm269, %v264, %v266
  %v275 = vsel %vm269, %v266, %v268
  %276 = vrot.lane.b32.xlu0 %v248, 126
  %v277 = vpop.permute.xlu0 %276
  %278 = vrot.lane.b32.xlu0 %v249, 126
  %v279 = vpop.permute.xlu0 %278
  %280 = vrot.lane.b32.xlu0 %v250, 126
  %v281 = vpop.permute.xlu0 %280
  %282 = vrot.lane.b32.xlu0 %v251, 126
  %v283 = vpop.permute.xlu0 %282
  %284 = vrot.lane.b32.xlu0 %v252, 126
  %v285 = vpop.permute.xlu0 %284
  %286 = vrot.lane.b32.xlu0 %v253, 126
  %v287 = vpop.permute.xlu0 %286
  %288 = vrot.lane.b32.xlu0 %v254, 126
  %v289 = vpop.permute.xlu0 %288
  %vm290 = vcmask 1031168
  %v291 = vsel %vm290, %v277, %v279
  %v292 = vsel %vm290, %v279, %v281
  %v293 = vsel %vm290, %v281, %v283
  %v294 = vsel %vm290, %v283, %v285
  %v295 = vsel %vm290, %v285, %v287
  %v296 = vsel %vm290, %v287, %v289
  %297 = vrot.lane.b32.xlu0 %v248, 110
  %v298 = vpop.permute.xlu0 %297
  %299 = vrot.lane.b32.xlu0 %v249, 110
  %v300 = vpop.permute.xlu0 %299
  %301 = vrot.lane.b32.xlu0 %v250, 110
  %v302 = vpop.permute.xlu0 %301
  %303 = vrot.lane.b32.xlu0 %v251, 110
  %v304 = vpop.permute.xlu0 %303
  %305 = vrot.lane.b32.xlu0 %v252, 110
  %v306 = vpop.permute.xlu0 %305
  %307 = vrot.lane.b32.xlu0 %v253, 110
  %v308 = vpop.permute.xlu0 %307
  %309 = vrot.lane.b32.xlu0 %v254, 110
  %v310 = vpop.permute.xlu0 %309
  %vm311 = vcmask 900096
  %v312 = vsel %vm311, %v298, %v300
  %v313 = vsel %vm311, %v300, %v302
  %v314 = vsel %vm311, %v302, %v304
  %v315 = vsel %vm311, %v304, %v306
  %v316 = vsel %vm311, %v306, %v308
  %v317 = vsel %vm311, %v308, %v310
  %v321 = vunpack.c.l.b16 %v230
  %v322 = vunpack.c.h.b16 %v230
  %v323 = vunpack.c.l.b16 %v231
  %v324 = vunpack.c.h.b16 %v231
  %v325 = vunpack.c.l.b16 %v232
  %v326 = vunpack.c.h.b16 %v232
  %v327 = vpack.c.b16 %v321, %v321
  %v328 = vpack.c.b16 %v322, %v322
  %v329 = vpack.c.b16 %v323, %v323
  %v330 = vpack.c.b16 %v324, %v324
  %v331 = vpack.c.b16 %v325, %v325
  %v332 = vpack.c.b16 %v326, %v326
  %333 = vrot.lane.b32.xlu0 %v327, 109
  %v334 = vpop.permute.xlu0 %333
  %335 = vrot.lane.b32.xlu0 %v328, 109
  %v336 = vpop.permute.xlu0 %335
  %337 = vrot.lane.b32.xlu0 %v329, 109
  %v338 = vpop.permute.xlu0 %337
  %339 = vrot.lane.b32.xlu0 %v330, 109
  %v340 = vpop.permute.xlu0 %339
  %341 = vrot.lane.b32.xlu0 %v331, 109
  %v342 = vpop.permute.xlu0 %341
  %343 = vrot.lane.b32.xlu0 %v332, 109
  %v344 = vpop.permute.xlu0 %343
  %vm345 = vcmask 891904
  %v346 = vsel %vm345, %v334, %v336
  %v347 = vsel %vm345, %v336, %v338
  %v348 = vsel %vm345, %v338, %v340
  %v349 = vsel %vm345, %v340, %v342
  %v350 = vsel %vm345, %v342, %v344
  %v355 = vunpack.c.l.b16 %v233
  %v356 = vunpack.c.h.b16 %v233
  %v357 = vunpack.c.l.b16 %v234
  %v358 = vunpack.c.h.b16 %v234
  %v359 = vunpack.c.l.b16 %v235
  %v360 = vunpack.c.h.b16 %v235
  %v361 = vunpack.c.l.b16 %v236
  %v362 = vpack.c.b16 %v355, %v355
  %v363 = vpack.c.b16 %v356, %v356
  %v364 = vpack.c.b16 %v357, %v357
  %v365 = vpack.c.b16 %v358, %v358
  %v366 = vpack.c.b16 %v359, %v359
  %v367 = vpack.c.b16 %v360, %v360
  %v368 = vpack.c.b16 %v361, %v361
  %369 = vrot.lane.b32.xlu0 %v362, 108
  %v370 = vpop.permute.xlu0 %369
  %371 = vrot.lane.b32.xlu0 %v363, 108
  %v372 = vpop.permute.xlu0 %371
  %373 = vrot.lane.b32.xlu0 %v364, 108
  %v374 = vpop.permute.xlu0 %373
  %375 = vrot.lane.b32.xlu0 %v365, 108
  %v376 = vpop.permute.xlu0 %375
  %377 = vrot.lane.b32.xlu0 %v366, 108
  %v378 = vpop.permute.xlu0 %377
  %379 = vrot.lane.b32.xlu0 %v367, 108
  %v380 = vpop.permute.xlu0 %379
  %381 = vrot.lane.b32.xlu0 %v368, 108
  %v382 = vpop.permute.xlu0 %381
  %vm383 = vcmask 883712
  %v384 = vsel %vm383, %v370, %v372
  %v385 = vsel %vm383, %v372, %v374
  %v386 = vsel %vm383, %v374, %v376
  %v387 = vsel %vm383, %v376, %v378
  %v388 = vsel %vm383, %v378, %v380
  %v389 = vsel %vm383, %v380, %v382
  %390 = vrot.lane.b32.xlu0 %v362, 92
  %v391 = vpop.permute.xlu0 %390
  %392 = vrot.lane.b32.xlu0 %v363, 92
  %v393 = vpop.permute.xlu0 %392
  %394 = vrot.lane.b32.xlu0 %v364, 92
  %v395 = vpop.permute.xlu0 %394
  %396 = vrot.lane.b32.xlu0 %v365, 92
  %v397 = vpop.permute.xlu0 %396
  %398 = vrot.lane.b32.xlu0 %v366, 92
  %v399 = vpop.permute.xlu0 %398
  %400 = vrot.lane.b32.xlu0 %v367, 92
  %v401 = vpop.permute.xlu0 %400
  %402 = vrot.lane.b32.xlu0 %v368, 92
  %v403 = vpop.permute.xlu0 %402
  %vm404 = vcmask 752640
  %v405 = vsel %vm404, %v391, %v393
  %v406 = vsel %vm404, %v393, %v395
  %v407 = vsel %vm404, %v395, %v397
  %v408 = vsel %vm404, %v397, %v399
  %v409 = vsel %vm404, %v399, %v401
  %v410 = vsel %vm404, %v401, %v403
  %411 = vrot.lane.b32.xlu0 %v362, 91
  %v412 = vpop.permute.xlu0 %411
  %413 = vrot.lane.b32.xlu0 %v363, 91
  %v414 = vpop.permute.xlu0 %413
  %415 = vrot.lane.b32.xlu0 %v364, 91
  %v416 = vpop.permute.xlu0 %415
  %417 = vrot.lane.b32.xlu0 %v365, 91
  %v418 = vpop.permute.xlu0 %417
  %419 = vrot.lane.b32.xlu0 %v366, 91
  %v420 = vpop.permute.xlu0 %419
  %421 = vrot.lane.b32.xlu0 %v367, 91
  %v422 = vpop.permute.xlu0 %421
  %423 = vrot.lane.b32.xlu0 %v368, 91
  %v424 = vpop.permute.xlu0 %423
  %vm425 = vcmask 744448
  %v426 = vsel %vm425, %v412, %v414
  %v427 = vsel %vm425, %v414, %v416
  %v428 = vsel %vm425, %v416, %v418
  %v429 = vsel %vm425, %v418, %v420
  %v430 = vsel %vm425, %v420, %v422
  %v431 = vsel %vm425, %v422, %v424
  %432 = vrot.lane.b32.xlu0 %v362, 90
  %v433 = vpop.permute.xlu0 %432
  %434 = vrot.lane.b32.xlu0 %v363, 90
  %v435 = vpop.permute.xlu0 %434
  %436 = vrot.lane.b32.xlu0 %v364, 90
  %v437 = vpop.permute.xlu0 %436
  %438 = vrot.lane.b32.xlu0 %v365, 90
  %v439 = vpop.permute.xlu0 %438
  %440 = vrot.lane.b32.xlu0 %v366, 90
  %v441 = vpop.permute.xlu0 %440
  %442 = vrot.lane.b32.xlu0 %v367, 90
  %v443 = vpop.permute.xlu0 %442
  %444 = vrot.lane.b32.xlu0 %v368, 90
  %v445 = vpop.permute.xlu0 %444
  %vm446 = vcmask 736256
  %v447 = vsel %vm446, %v433, %v435
  %v448 = vsel %vm446, %v435, %v437
  %v449 = vsel %vm446, %v437, %v439
  %v450 = vsel %vm446, %v439, %v441
  %v451 = vsel %vm446, %v441, %v443
  %v452 = vsel %vm446, %v443, %v445
  %v455 = vsel %vm98, %v248, %v270
  %v458 = vsel %vm98, %v249, %v271
  %v461 = vsel %vm98, %v250, %v272
  %v464 = vsel %vm98, %v251, %v273
  %v467 = vsel %vm98, %v252, %v274
  %v470 = vsel %vm98, %v253, %v275
  %v473 = vsel %vm98, %v254, %v268
  %v476 = vsel %vm98, %v291, %v312
  %v479 = vsel %vm98, %v292, %v313
  %v482 = vsel %vm98, %v293, %v314
  %v485 = vsel %vm98, %v294, %v315
  %v488 = vsel %vm98, %v295, %v316
  %v491 = vsel %vm98, %v296, %v317
  %v494 = vsel %vm98, %v289, %v310
  %v497 = vsel %vm98, %v334, %v370
  %v500 = vsel %vm98, %v346, %v384
  %v503 = vsel %vm98, %v347, %v385
  %v506 = vsel %vm98, %v348, %v386
  %v509 = vsel %vm98, %v349, %v387
  %v512 = vsel %vm98, %v350, %v388
  %v515 = vsel %vm98, %v344, %v389
  %v518 = vsel %vm98, %v391, %v412
  %v521 = vsel %vm98, %v405, %v426
  %v524 = vsel %vm98, %v406, %v427
  %v527 = vsel %vm98, %v407, %v428
  %v530 = vsel %vm98, %v408, %v429
  %v533 = vsel %vm98, %v409, %v430
  %v536 = vsel %vm98, %v410, %v431
  %v537 = vld [vmem:[%s4] sm:$0xf]
  %566 = vrot.lane.b32.xlu0 %v455, 19
  %v567 = vpop.permute.xlu0 %566
  %568 = vrot.lane.b32.xlu0 %v458, 19
  %v569 = vpop.permute.xlu0 %568
  %570 = vrot.lane.b32.xlu0 %v461, 19
  %v571 = vpop.permute.xlu0 %570
  %572 = vrot.lane.b32.xlu0 %v464, 19
  %v573 = vpop.permute.xlu0 %572
  %574 = vrot.lane.b32.xlu0 %v467, 19
  %v575 = vpop.permute.xlu0 %574
  %576 = vrot.lane.b32.xlu0 %v470, 19
  %v577 = vpop.permute.xlu0 %576
  %578 = vrot.lane.b32.xlu0 %v473, 19
  %v579 = vpop.permute.xlu0 %578
  %580 = vrot.lane.b32.xlu0 %v476, 19
  %v581 = vpop.permute.xlu0 %580
  %582 = vrot.lane.b32.xlu0 %v479, 19
  %v583 = vpop.permute.xlu0 %582
  %584 = vrot.lane.b32.xlu0 %v482, 19
  %v585 = vpop.permute.xlu0 %584
  %586 = vrot.lane.b32.xlu0 %v485, 19
  %v587 = vpop.permute.xlu0 %586
  %588 = vrot.lane.b32.xlu0 %v488, 19
  %v589 = vpop.permute.xlu0 %588
  %590 = vrot.lane.b32.xlu0 %v491, 19
  %v591 = vpop.permute.xlu0 %590
  %592 = vrot.lane.b32.xlu0 %v494, 19
  %v593 = vpop.permute.xlu0 %592
  %594 = vrot.lane.b32.xlu0 %v497, 19
  %v595 = vpop.permute.xlu0 %594
  %596 = vrot.lane.b32.xlu0 %v500, 19
  %v597 = vpop.permute.xlu0 %596
  %598 = vrot.lane.b32.xlu0 %v503, 19
  %v599 = vpop.permute.xlu0 %598
  %600 = vrot.lane.b32.xlu0 %v506, 19
  %v601 = vpop.permute.xlu0 %600
  %602 = vrot.lane.b32.xlu0 %v509, 19
  %v603 = vpop.permute.xlu0 %602
  %604 = vrot.lane.b32.xlu0 %v512, 19
  %v605 = vpop.permute.xlu0 %604
  %606 = vrot.lane.b32.xlu0 %v515, 19
  %v607 = vpop.permute.xlu0 %606
  %608 = vrot.lane.b32.xlu0 %v518, 19
  %v609 = vpop.permute.xlu0 %608
  %610 = vrot.lane.b32.xlu0 %v521, 19
  %v611 = vpop.permute.xlu0 %610
  %612 = vrot.lane.b32.xlu0 %v524, 19
  %v613 = vpop.permute.xlu0 %612
  %614 = vrot.lane.b32.xlu0 %v527, 19
  %v615 = vpop.permute.xlu0 %614
  %616 = vrot.lane.b32.xlu0 %v530, 19
  %v617 = vpop.permute.xlu0 %616
  %618 = vrot.lane.b32.xlu0 %v533, 19
  %v619 = vpop.permute.xlu0 %618
  %620 = vrot.lane.b32.xlu0 %v536, 19
  %v621 = vpop.permute.xlu0 %620
  %622 = vrot.lane.b32.xlu0 %v433, 19
  %v623 = vpop.permute.xlu0 %622
  %624 = vrot.lane.b32.xlu0 %v447, 19
  %v625 = vpop.permute.xlu0 %624
  %626 = vrot.lane.b32.xlu0 %v448, 19
  %v627 = vpop.permute.xlu0 %626
  %628 = vrot.lane.b32.xlu0 %v449, 19
  %v629 = vpop.permute.xlu0 %628
  %630 = vrot.lane.b32.xlu0 %v450, 19
  %v631 = vpop.permute.xlu0 %630
  %632 = vrot.lane.b32.xlu0 %v451, 19
  %v633 = vpop.permute.xlu0 %632
  %634 = vrot.lane.b32.xlu0 %v452, 19
  %v635 = vpop.permute.xlu0 %634
  %vm636 = vcmask 154624
  %v637 = vsel %vm636, %v567, %v569
  %v638 = vsel %vm636, %v569, %v571
  %v639 = vsel %vm636, %v571, %v573
  %v640 = vsel %vm636, %v573, %v575
  %v641 = vsel %vm636, %v575, %v577
  %v642 = vsel %vm636, %v577, %v579
  %v643 = vsel %vm636, %v581, %v583
  %v644 = vsel %vm636, %v583, %v585
  %v645 = vsel %vm636, %v585, %v587
  %v646 = vsel %vm636, %v587, %v589
  %v647 = vsel %vm636, %v589, %v591
  %v648 = vsel %vm636, %v591, %v593
  %v649 = vsel %vm636, %v595, %v597
  %v650 = vsel %vm636, %v597, %v599
  %v651 = vsel %vm636, %v599, %v601
  %v652 = vsel %vm636, %v601, %v603
  %v653 = vsel %vm636, %v603, %v605
  %v654 = vsel %vm636, %v605, %v607
  %v655 = vsel %vm636, %v609, %v611
  %v656 = vsel %vm636, %v611, %v613
  %v657 = vsel %vm636, %v613, %v615
  %v658 = vsel %vm636, %v615, %v617
  %v659 = vsel %vm636, %v617, %v619
  %v660 = vsel %vm636, %v619, %v621
  %v661 = vsel %vm636, %v623, %v625
  %v662 = vsel %vm636, %v625, %v627
  %v663 = vsel %vm636, %v627, %v629
  %v664 = vsel %vm636, %v629, %v631
  %v665 = vsel %vm636, %v631, %v633
  %v666 = vsel %vm636, %v633, %v635
  %vm691 = vcmask 588800
  %v693 = vsel %vm691, %v537, 0
  %v696 = vsel %vm98, %v661, 0
  %v699 = vsel %vm98, %v662, 0
  %v702 = vsel %vm98, %v663, 0
  %v705 = vsel %vm98, %v664, 0
  %v708 = vsel %vm98, %v665, 0
  %v711 = vsel %vm98, %v666, 0
  %713 = vmatpush.bf16.msra.mxu0 0
  %714 = vmatpush.bf16.msra.mxu0 0
  %715 = vmatpush.bf16.msra.mxu0 0
  %716 = vmatpush.bf16.msra.mxu0 %v696
  %717 = vmatpush.bf16.msra.mxu0 %v655
  %718 = vmatpush.bf16.msra.mxu0 %v649
  %719 = vmatpush.bf16.msra.mxu0 %v643
  %720 = vmatpush.bf16.msra.mxu0 %v637
  %721 = vmatmul.bf16.gmra.mxu0 %v693
  %v722 = vpop.f32.mrf.mxu0
  %v723 = vadd.f32 0.0, %v722
  %v724 = vpop.f32.mrf.mxu0
  %725 = vdwg.mxu0
  %726 = vmatpush.bf16.msra.mxu0 0
  %727 = vmatpush.bf16.msra.mxu0 0
  %728 = vmatpush.bf16.msra.mxu0 0
  %729 = vmatpush.bf16.msra.mxu0 %v699
  %730 = vmatpush.bf16.msra.mxu0 %v656
  %731 = vmatpush.bf16.msra.mxu0 %v650
  %732 = vmatpush.bf16.msra.mxu0 %v644
  %733 = vmatpush.bf16.msra.mxu0 %v638
  %734 = vmatmul.bf16.gmra.mxu0 %v693
  %v735 = vpop.f32.mrf.mxu0
  %v736 = vadd.f32 0.0, %v735
  %v737 = vpop.f32.mrf.mxu0
  %738 = vdwg.mxu0
  %739 = vmatpush.bf16.msra.mxu0 0
  %740 = vmatpush.bf16.msra.mxu0 0
  %741 = vmatpush.bf16.msra.mxu0 0
  %742 = vmatpush.bf16.msra.mxu0 %v702
  %743 = vmatpush.bf16.msra.mxu0 %v657
  %744 = vmatpush.bf16.msra.mxu0 %v651
  %745 = vmatpush.bf16.msra.mxu0 %v645
  %746 = vmatpush.bf16.msra.mxu0 %v639
  %747 = vmatmul.bf16.gmra.mxu0 %v693
  %v748 = vpop.f32.mrf.mxu0
  %v749 = vadd.f32 0.0, %v748
  %v750 = vpop.f32.mrf.mxu0
  %751 = vdwg.mxu0
  %752 = vmatpush.bf16.msra.mxu0 0
  %753 = vmatpush.bf16.msra.mxu0 0
  %754 = vmatpush.bf16.msra.mxu0 0
  %755 = vmatpush.bf16.msra.mxu0 %v705
  %756 = vmatpush.bf16.msra.mxu0 %v658
  %757 = vmatpush.bf16.msra.mxu0 %v652
  %758 = vmatpush.bf16.msra.mxu0 %v646
  %759 = vmatpush.bf16.msra.mxu0 %v640
  %760 = vmatmul.bf16.gmra.mxu0 %v693
  %v761 = vpop.f32.mrf.mxu0
  %v762 = vadd.f32 0.0, %v761
  %v763 = vpop.f32.mrf.mxu0
  %764 = vdwg.mxu0
  %765 = vmatpush.bf16.msra.mxu0 0
  %766 = vmatpush.bf16.msra.mxu0 0
  %767 = vmatpush.bf16.msra.mxu0 0
  %768 = vmatpush.bf16.msra.mxu0 %v708
  %769 = vmatpush.bf16.msra.mxu0 %v659
  %770 = vmatpush.bf16.msra.mxu0 %v653
  %771 = vmatpush.bf16.msra.mxu0 %v647
  %772 = vmatpush.bf16.msra.mxu0 %v641
  %773 = vmatmul.bf16.gmra.mxu0 %v693
  %v774 = vpop.f32.mrf.mxu0
  %v775 = vadd.f32 0.0, %v774
  %v776 = vpop.f32.mrf.mxu0
  %777 = vdwg.mxu0
  %778 = vmatpush.bf16.msra.mxu0 0
  %779 = vmatpush.bf16.msra.mxu0 0
  %780 = vmatpush.bf16.msra.mxu0 0
  %781 = vmatpush.bf16.msra.mxu0 %v711
  %782 = vmatpush.bf16.msra.mxu0 %v660
  %783 = vmatpush.bf16.msra.mxu0 %v654
  %784 = vmatpush.bf16.msra.mxu0 %v648
  %785 = vmatpush.bf16.msra.mxu0 %v642
  %786 = vmatmul.bf16.gmra.mxu0 %v693
  %v787 = vpop.f32.mrf.mxu0
  %v788 = vadd.f32 0.0, %v787
  %v789 = vpop.f32.mrf.mxu0
  %790 = vdwg.mxu0
  %v791 = vmul.f32 %v723, %v196
  %v792 = vmul.f32 %v736, %v197
  %v793 = vmul.f32 %v749, %v198
  %v794 = vmul.f32 %v762, %v199
  %v795 = vmul.f32 %v775, %v200
  %v796 = vmul.f32 %v788, %v201
  %v797 = vadd.f32 %v791, %v792
  %v798 = vadd.f32 %v797, %v793
  %v799 = vadd.f32 %v798, %v794
  %v800 = vadd.f32 %v799, %v795
  %v801 = vadd.f32 %v800, %v796
  %802 = vadd.xlane.f32.xlu0 %v801
  %v803 = vpop.xlane.xlu0 %802
  %v804 = vmul.f32 %v803, 0.001953125
  %v805 = vmul.f32 %v791, %v723
  %v806 = vmul.f32 %v792, %v736
  %v807 = vmul.f32 %v793, %v749
  %v808 = vmul.f32 %v794, %v762
  %v809 = vmul.f32 %v795, %v775
  %v810 = vmul.f32 %v796, %v788
  %v811 = vadd.f32 %v805, %v806
  %v812 = vadd.f32 %v811, %v807
  %v813 = vadd.f32 %v812, %v808
  %v814 = vadd.f32 %v813, %v809
  %v815 = vadd.f32 %v814, %v810
  %816 = vadd.xlane.f32.xlu0 %v815
  %v817 = vpop.xlane.xlu0 %816
  %v818 = vmul.f32 %v817, 0.001953125
  %v819 = vld [vmem:[%s5] sm:$0xff]
  %v820 = vmul.f32 %v804, %v804
  %v821 = vsub.f32 %v818, %v820
  %v822 = vadd.f32 %v821, 1e-05
  %v823 = vrsqrt.pop %v822
  %v824 = vmul.f32 %v823, %v822
  %v825 = vmul.f32 %v824, %v823
  %v826 = vmul.f32 0.5, %v825
  %v827 = vsub.f32 1.5, %v826
  %v828 = vmul.f32 %v823, %v827
  %vm829 = vweird.f32 %v822
  %vm830 = vweird.f32 %v823
  %vm831 = vmor %vm829, %vm830
  %v832 = vsel %vm831, %v823, %v828
  %v833 = vmul.f32 %v819, %v832
  %v834 = vld [vmem:[%s6] sm:$0xff]
  %v835 = vmul.f32 %v804, %v833
  %v836 = vsub.f32 %v834, %v835
  %838 = vset.pattern.permute.xlu0 0
  %839 = vperm.xlu0 %838, %v833
  %v840 = vpop.permute.xlu0 %839
  %v842 = vmul.f32 %v723, %v840
  %v843 = vmul.f32 %v736, %v840
  %v844 = vmul.f32 %v749, %v840
  %v845 = vmul.f32 %v762, %v840
  %v846 = vmul.f32 %v775, %v840
  %v847 = vmul.f32 %v788, %v840
  %849 = vset.pattern.permute.xlu0 0
  %850 = vperm.xlu0 %849, %v836
  %v851 = vpop.permute.xlu0 %850
  %v853 = vadd.f32 %v842, %v851
  %v854 = vadd.f32 %v843, %v851
  %v855 = vadd.f32 %v844, %v851
  %v856 = vadd.f32 %v845, %v851
  %v857 = vadd.f32 %v846, %v851
  %v858 = vadd.f32 %v847, %v851
  %v859 = vmul.f32 %v853, 0.01
  %v860 = vmul.f32 %v854, 0.01
  %v861 = vmul.f32 %v855, 0.01
  %v862 = vmul.f32 %v856, 0.01
  %v863 = vmul.f32 %v857, 0.01
  %v864 = vmul.f32 %v858, 0.01
  %v865 = vmax.f32 %v853, %v859
  %v866 = vmax.f32 %v854, %v860
  %v867 = vmax.f32 %v855, %v861
  %v868 = vmax.f32 %v856, %v862
  %v869 = vmax.f32 %v857, %v863
  %v870 = vmax.f32 %v858, %v864
  %v871 = vmul.f32 %v865, %v196
  %v872 = vmul.f32 %v866, %v197
  %v873 = vmul.f32 %v867, %v198
  %v874 = vmul.f32 %v868, %v199
  %v875 = vmul.f32 %v869, %v200
  %v876 = vmul.f32 %v870, %v201
  %v877 = vpack.c.bf16 %v872, %v871
  %v878 = vpack.c.bf16 %v874, %v873
  %v879 = vpack.c.bf16 %v876, %v875
  %880 = vst [vmem:[#allocation2 + $0x4] sm:$0xff] %v877
  %881 = vst [vmem:[#allocation2 + $0xc] sm:$0xff] %v878
  %882 = vst [vmem:[#allocation2 + $0x14] sm:$0xff] %v879
  %v883 = vld [vmem:[#allocation2] sm:$0xff]
  %v884 = vld [vmem:[#allocation2 + $0x8] sm:$0xff]
  %v885 = vld [vmem:[#allocation2 + $0x10] sm:$0xff]
  %v886 = vld [vmem:[#allocation2 + $0x18] sm:$0xf]
  %v887 = vld [vmem:[#allocation2 + $0x4] sm:$0xff]
  %v888 = vld [vmem:[#allocation2 + $0xc] sm:$0xff]
  %v889 = vld [vmem:[#allocation2 + $0x14] sm:$0xff]
  %v890 = vld [vmem:[#allocation2 + $0x4] sm:$0xff]
  %v891 = vld [vmem:[#allocation2 + $0xc] sm:$0xff]
  %v892 = vld [vmem:[#allocation2 + $0x14] sm:$0xff]
  %v893 = vld [vmem:[#allocation2 + $0x1c] sm:$0xf]
  %v898 = vunpack.c.l.b16 %v883
  %v899 = vunpack.c.h.b16 %v883
  %v900 = vunpack.c.l.b16 %v884
  %v901 = vunpack.c.h.b16 %v884
  %v902 = vunpack.c.l.b16 %v885
  %v903 = vunpack.c.h.b16 %v885
  %v904 = vunpack.c.l.b16 %v886
  %v905 = vpack.c.b16 %v898, %v898
  %v906 = vpack.c.b16 %v899, %v899
  %v907 = vpack.c.b16 %v900, %v900
  %v908 = vpack.c.b16 %v901, %v901
  %v909 = vpack.c.b16 %v902, %v902
  %v910 = vpack.c.b16 %v903, %v903
  %v911 = vpack.c.b16 %v904, %v904
  %912 = vrot.lane.b32.xlu0 %v905, 127
  %v913 = vpop.permute.xlu0 %912
  %914 = vrot.lane.b32.xlu0 %v906, 127
  %v915 = vpop.permute.xlu0 %914
  %916 = vrot.lane.b32.xlu0 %v907, 127
  %v917 = vpop.permute.xlu0 %916
  %918 = vrot.lane.b32.xlu0 %v908, 127
  %v919 = vpop.permute.xlu0 %918
  %920 = vrot.lane.b32.xlu0 %v909, 127
  %v921 = vpop.permute.xlu0 %920
  %922 = vrot.lane.b32.xlu0 %v910, 127
  %v923 = vpop.permute.xlu0 %922
  %924 = vrot.lane.b32.xlu0 %v911, 127
  %v925 = vpop.permute.xlu0 %924
  %v926 = vsel %vm269, %v913, %v915
  %v927 = vsel %vm269, %v915, %v917
  %v928 = vsel %vm269, %v917, %v919
  %v929 = vsel %vm269, %v919, %v921
  %v930 = vsel %vm269, %v921, %v923
  %v931 = vsel %vm269, %v923, %v925
  %932 = vrot.lane.b32.xlu0 %v905, 126
  %v933 = vpop.permute.xlu0 %932
  %934 = vrot.lane.b32.xlu0 %v906, 126
  %v935 = vpop.permute.xlu0 %934
  %936 = vrot.lane.b32.xlu0 %v907, 126
  %v937 = vpop.permute.xlu0 %936
  %938 = vrot.lane.b32.xlu0 %v908, 126
  %v939 = vpop.permute.xlu0 %938
  %940 = vrot.lane.b32.xlu0 %v909, 126
  %v941 = vpop.permute.xlu0 %940
  %942 = vrot.lane.b32.xlu0 %v910, 126
  %v943 = vpop.permute.xlu0 %942
  %944 = vrot.lane.b32.xlu0 %v911, 126
  %v945 = vpop.permute.xlu0 %944
  %v946 = vsel %vm290, %v933, %v935
  %v947 = vsel %vm290, %v935, %v937
  %v948 = vsel %vm290, %v937, %v939
  %v949 = vsel %vm290, %v939, %v941
  %v950 = vsel %vm290, %v941, %v943
  %v951 = vsel %vm290, %v943, %v945
  %952 = vrot.lane.b32.xlu0 %v905, 110
  %v953 = vpop.permute.xlu0 %952
  %954 = vrot.lane.b32.xlu0 %v906, 110
  %v955 = vpop.permute.xlu0 %954
  %956 = vrot.lane.b32.xlu0 %v907, 110
  %v957 = vpop.permute.xlu0 %956
  %958 = vrot.lane.b32.xlu0 %v908, 110
  %v959 = vpop.permute.xlu0 %958
  %960 = vrot.lane.b32.xlu0 %v909, 110
  %v961 = vpop.permute.xlu0 %960
  %962 = vrot.lane.b32.xlu0 %v910, 110
  %v963 = vpop.permute.xlu0 %962
  %964 = vrot.lane.b32.xlu0 %v911, 110
  %v965 = vpop.permute.xlu0 %964
  %v966 = vsel %vm311, %v953, %v955
  %v967 = vsel %vm311, %v955, %v957
  %v968 = vsel %vm311, %v957, %v959
  %v969 = vsel %vm311, %v959, %v961
  %v970 = vsel %vm311, %v961, %v963
  %v971 = vsel %vm311, %v963, %v965
  %v975 = vunpack.c.l.b16 %v887
  %v976 = vunpack.c.h.b16 %v887
  %v977 = vunpack.c.l.b16 %v888
  %v978 = vunpack.c.h.b16 %v888
  %v979 = vunpack.c.l.b16 %v889
  %v980 = vunpack.c.h.b16 %v889
  %v981 = vpack.c.b16 %v975, %v975
  %v982 = vpack.c.b16 %v976, %v976
  %v983 = vpack.c.b16 %v977, %v977
  %v984 = vpack.c.b16 %v978, %v978
  %v985 = vpack.c.b16 %v979, %v979
  %v986 = vpack.c.b16 %v980, %v980
  %987 = vrot.lane.b32.xlu0 %v981, 109
  %v988 = vpop.permute.xlu0 %987
  %989 = vrot.lane.b32.xlu0 %v982, 109
  %v990 = vpop.permute.xlu0 %989
  %991 = vrot.lane.b32.xlu0 %v983, 109
  %v992 = vpop.permute.xlu0 %991
  %993 = vrot.lane.b32.xlu0 %v984, 109
  %v994 = vpop.permute.xlu0 %993
  %995 = vrot.lane.b32.xlu0 %v985, 109
  %v996 = vpop.permute.xlu0 %995
  %997 = vrot.lane.b32.xlu0 %v986, 109
  %v998 = vpop.permute.xlu0 %997
  %v999 = vsel %vm345, %v988, %v990
  %v1000 = vsel %vm345, %v990, %v992
  %v1001 = vsel %vm345, %v992, %v994
  %v1002 = vsel %vm345, %v994, %v996
  %v1003 = vsel %vm345, %v996, %v998
  %v1008 = vunpack.c.l.b16 %v890
  %v1009 = vunpack.c.h.b16 %v890
  %v1010 = vunpack.c.l.b16 %v891
  %v1011 = vunpack.c.h.b16 %v891
  %v1012 = vunpack.c.l.b16 %v892
  %v1013 = vunpack.c.h.b16 %v892
  %v1014 = vunpack.c.l.b16 %v893
  %v1015 = vpack.c.b16 %v1008, %v1008
  %v1016 = vpack.c.b16 %v1009, %v1009
  %v1017 = vpack.c.b16 %v1010, %v1010
  %v1018 = vpack.c.b16 %v1011, %v1011
  %v1019 = vpack.c.b16 %v1012, %v1012
  %v1020 = vpack.c.b16 %v1013, %v1013
  %v1021 = vpack.c.b16 %v1014, %v1014
  %1022 = vrot.lane.b32.xlu0 %v1015, 108
  %v1023 = vpop.permute.xlu0 %1022
  %1024 = vrot.lane.b32.xlu0 %v1016, 108
  %v1025 = vpop.permute.xlu0 %1024
  %1026 = vrot.lane.b32.xlu0 %v1017, 108
  %v1027 = vpop.permute.xlu0 %1026
  %1028 = vrot.lane.b32.xlu0 %v1018, 108
  %v1029 = vpop.permute.xlu0 %1028
  %1030 = vrot.lane.b32.xlu0 %v1019, 108
  %v1031 = vpop.permute.xlu0 %1030
  %1032 = vrot.lane.b32.xlu0 %v1020, 108
  %v1033 = vpop.permute.xlu0 %1032
  %1034 = vrot.lane.b32.xlu0 %v1021, 108
  %v1035 = vpop.permute.xlu0 %1034
  %v1036 = vsel %vm383, %v1023, %v1025
  %v1037 = vsel %vm383, %v1025, %v1027
  %v1038 = vsel %vm383, %v1027, %v1029
  %v1039 = vsel %vm383, %v1029, %v1031
  %v1040 = vsel %vm383, %v1031, %v1033
  %v1041 = vsel %vm383, %v1033, %v1035
  %1042 = vrot.lane.b32.xlu0 %v1015, 92
  %v1043 = vpop.permute.xlu0 %1042
  %1044 = vrot.lane.b32.xlu0 %v1016, 92
  %v1045 = vpop.permute.xlu0 %1044
  %1046 = vrot.lane.b32.xlu0 %v1017, 92
  %v1047 = vpop.permute.xlu0 %1046
  %1048 = vrot.lane.b32.xlu0 %v1018, 92
  %v1049 = vpop.permute.xlu0 %1048
  %1050 = vrot.lane.b32.xlu0 %v1019, 92
  %v1051 = vpop.permute.xlu0 %1050
  %1052 = vrot.lane.b32.xlu0 %v1020, 92
  %v1053 = vpop.permute.xlu0 %1052
  %1054 = vrot.lane.b32.xlu0 %v1021, 92
  %v1055 = vpop.permute.xlu0 %1054
  %v1056 = vsel %vm404, %v1043, %v1045
  %v1057 = vsel %vm404, %v1045, %v1047
  %v1058 = vsel %vm404, %v1047, %v1049
  %v1059 = vsel %vm404, %v1049, %v1051
  %v1060 = vsel %vm404, %v1051, %v1053
  %v1061 = vsel %vm404, %v1053, %v1055
  %1062 = vrot.lane.b32.xlu0 %v1015, 91
  %v1063 = vpop.permute.xlu0 %1062
  %1064 = vrot.lane.b32.xlu0 %v1016, 91
  %v1065 = vpop.permute.xlu0 %1064
  %1066 = vrot.lane.b32.xlu0 %v1017, 91
  %v1067 = vpop.permute.xlu0 %1066
  %1068 = vrot.lane.b32.xlu0 %v1018, 91
  %v1069 = vpop.permute.xlu0 %1068
  %1070 = vrot.lane.b32.xlu0 %v1019, 91
  %v1071 = vpop.permute.xlu0 %1070
  %1072 = vrot.lane.b32.xlu0 %v1020, 91
  %v1073 = vpop.permute.xlu0 %1072
  %1074 = vrot.lane.b32.xlu0 %v1021, 91
  %v1075 = vpop.permute.xlu0 %1074
  %v1076 = vsel %vm425, %v1063, %v1065
  %v1077 = vsel %vm425, %v1065, %v1067
  %v1078 = vsel %vm425, %v1067, %v1069
  %v1079 = vsel %vm425, %v1069, %v1071
  %v1080 = vsel %vm425, %v1071, %v1073
  %v1081 = vsel %vm425, %v1073, %v1075
  %1082 = vrot.lane.b32.xlu0 %v1015, 90
  %v1083 = vpop.permute.xlu0 %1082
  %1084 = vrot.lane.b32.xlu0 %v1016, 90
  %v1085 = vpop.permute.xlu0 %1084
  %1086 = vrot.lane.b32.xlu0 %v1017, 90
  %v1087 = vpop.permute.xlu0 %1086
  %1088 = vrot.lane.b32.xlu0 %v1018, 90
  %v1089 = vpop.permute.xlu0 %1088
  %1090 = vrot.lane.b32.xlu0 %v1019, 90
  %v1091 = vpop.permute.xlu0 %1090
  %1092 = vrot.lane.b32.xlu0 %v1020, 90
  %v1093 = vpop.permute.xlu0 %1092
  %1094 = vrot.lane.b32.xlu0 %v1021, 90
  %v1095 = vpop.permute.xlu0 %1094
  %v1096 = vsel %vm446, %v1083, %v1085
  %v1097 = vsel %vm446, %v1085, %v1087
  %v1098 = vsel %vm446, %v1087, %v1089
  %v1099 = vsel %vm446, %v1089, %v1091
  %v1100 = vsel %vm446, %v1091, %v1093
  %v1101 = vsel %vm446, %v1093, %v1095
  %v1104 = vsel %vm98, %v905, %v926
  %v1107 = vsel %vm98, %v906, %v927
  %v1110 = vsel %vm98, %v907, %v928
  %v1113 = vsel %vm98, %v908, %v929
  %v1116 = vsel %vm98, %v909, %v930
  %v1119 = vsel %vm98, %v910, %v931
  %v1122 = vsel %vm98, %v911, %v925
  %v1125 = vsel %vm98, %v946, %v966
  %v1128 = vsel %vm98, %v947, %v967
  %v1131 = vsel %vm98, %v948, %v968
  %v1134 = vsel %vm98, %v949, %v969
  %v1137 = vsel %vm98, %v950, %v970
  %v1140 = vsel %vm98, %v951, %v971
  %v1143 = vsel %vm98, %v945, %v965
  %v1146 = vsel %vm98, %v988, %v1023
  %v1149 = vsel %vm98, %v999, %v1036
  %v1152 = vsel %vm98, %v1000, %v1037
  %v1155 = vsel %vm98, %v1001, %v1038
  %v1158 = vsel %vm98, %v1002, %v1039
  %v1161 = vsel %vm98, %v1003, %v1040
  %v1164 = vsel %vm98, %v998, %v1041
  %v1167 = vsel %vm98, %v1043, %v1063
  %v1170 = vsel %vm98, %v1056, %v1076
  %v1173 = vsel %vm98, %v1057, %v1077
  %v1176 = vsel %vm98, %v1058, %v1078
  %v1179 = vsel %vm98, %v1059, %v1079
  %v1182 = vsel %vm98, %v1060, %v1080
  %v1185 = vsel %vm98, %v1061, %v1081
  %v1186 = vld [vmem:[%s7] sm:$0xf]
  %1215 = vrot.lane.b32.xlu0 %v1104, 19
  %v1216 = vpop.permute.xlu0 %1215
  %1217 = vrot.lane.b32.xlu0 %v1107, 19
  %v1218 = vpop.permute.xlu0 %1217
  %1219 = vrot.lane.b32.xlu0 %v1110, 19
  %v1220 = vpop.permute.xlu0 %1219
  %1221 = vrot.lane.b32.xlu0 %v1113, 19
  %v1222 = vpop.permute.xlu0 %1221
  %1223 = vrot.lane.b32.xlu0 %v1116, 19
  %v1224 = vpop.permute.xlu0 %1223
  %1225 = vrot.lane.b32.xlu0 %v1119, 19
  %v1226 = vpop.permute.xlu0 %1225
  %1227 = vrot.lane.b32.xlu0 %v1122, 19
  %v1228 = vpop.permute.xlu0 %1227
  %1229 = vrot.lane.b32.xlu0 %v1125, 19
  %v1230 = vpop.permute.xlu0 %1229
  %1231 = vrot.lane.b32.xlu0 %v1128, 19
  %v1232 = vpop.permute.xlu0 %1231
  %1233 = vrot.lane.b32.xlu0 %v1131, 19
  %v1234 = vpop.permute.xlu0 %1233
  %1235 = vrot.lane.b32.xlu0 %v1134, 19
  %v1236 = vpop.permute.xlu0 %1235
  %1237 = vrot.lane.b32.xlu0 %v1137, 19
  %v1238 = vpop.permute.xlu0 %1237
  %1239 = vrot.lane.b32.xlu0 %v1140, 19
  %v1240 = vpop.permute.xlu0 %1239
  %1241 = vrot.lane.b32.xlu0 %v1143, 19
  %v1242 = vpop.permute.xlu0 %1241
  %1243 = vrot.lane.b32.xlu0 %v1146, 19
  %v1244 = vpop.permute.xlu0 %1243
  %1245 = vrot.lane.b32.xlu0 %v1149, 19
  %v1246 = vpop.permute.xlu0 %1245
  %1247 = vrot.lane.b32.xlu0 %v1152, 19
  %v1248 = vpop.permute.xlu0 %1247
  %1249 = vrot.lane.b32.xlu0 %v1155, 19
  %v1250 = vpop.permute.xlu0 %1249
  %1251 = vrot.lane.b32.xlu0 %v1158, 19
  %v1252 = vpop.permute.xlu0 %1251
  %1253 = vrot.lane.b32.xlu0 %v1161, 19
  %v1254 = vpop.permute.xlu0 %1253
  %1255 = vrot.lane.b32.xlu0 %v1164, 19
  %v1256 = vpop.permute.xlu0 %1255
  %1257 = vrot.lane.b32.xlu0 %v1167, 19
  %v1258 = vpop.permute.xlu0 %1257
  %1259 = vrot.lane.b32.xlu0 %v1170, 19
  %v1260 = vpop.permute.xlu0 %1259
  %1261 = vrot.lane.b32.xlu0 %v1173, 19
  %v1262 = vpop.permute.xlu0 %1261
  %1263 = vrot.lane.b32.xlu0 %v1176, 19
  %v1264 = vpop.permute.xlu0 %1263
  %1265 = vrot.lane.b32.xlu0 %v1179, 19
  %v1266 = vpop.permute.xlu0 %1265
  %1267 = vrot.lane.b32.xlu0 %v1182, 19
  %v1268 = vpop.permute.xlu0 %1267
  %1269 = vrot.lane.b32.xlu0 %v1185, 19
  %v1270 = vpop.permute.xlu0 %1269
  %1271 = vrot.lane.b32.xlu0 %v1083, 19
  %v1272 = vpop.permute.xlu0 %1271
  %1273 = vrot.lane.b32.xlu0 %v1096, 19
  %v1274 = vpop.permute.xlu0 %1273
  %1275 = vrot.lane.b32.xlu0 %v1097, 19
  %v1276 = vpop.permute.xlu0 %1275
  %1277 = vrot.lane.b32.xlu0 %v1098, 19
  %v1278 = vpop.permute.xlu0 %1277
  %1279 = vrot.lane.b32.xlu0 %v1099, 19
  %v1280 = vpop.permute.xlu0 %1279
  %1281 = vrot.lane.b32.xlu0 %v1100, 19
  %v1282 = vpop.permute.xlu0 %1281
  %1283 = vrot.lane.b32.xlu0 %v1101, 19
  %v1284 = vpop.permute.xlu0 %1283
  %v1285 = vsel %vm636, %v1216, %v1218
  %v1286 = vsel %vm636, %v1218, %v1220
  %v1287 = vsel %vm636, %v1220, %v1222
  %v1288 = vsel %vm636, %v1222, %v1224
  %v1289 = vsel %vm636, %v1224, %v1226
  %v1290 = vsel %vm636, %v1226, %v1228
  %v1291 = vsel %vm636, %v1230, %v1232
  %v1292 = vsel %vm636, %v1232, %v1234
  %v1293 = vsel %vm636, %v1234, %v1236
  %v1294 = vsel %vm636, %v1236, %v1238
  %v1295 = vsel %vm636, %v1238, %v1240
  %v1296 = vsel %vm636, %v1240, %v1242
  %v1297 = vsel %vm636, %v1244, %v1246
  %v1298 = vsel %vm636, %v1246, %v1248
  %v1299 = vsel %vm636, %v1248, %v1250
  %v1300 = vsel %vm636, %v1250, %v1252
  %v1301 = vsel %vm636, %v1252, %v1254
  %v1302 = vsel %vm636, %v1254, %v1256
  %v1303 = vsel %vm636, %v1258, %v1260
  %v1304 = vsel %vm636, %v1260, %v1262
  %v1305 = vsel %vm636, %v1262, %v1264
  %v1306 = vsel %vm636, %v1264, %v1266
  %v1307 = vsel %vm636, %v1266, %v1268
  %v1308 = vsel %vm636, %v1268, %v1270
  %v1309 = vsel %vm636, %v1272, %v1274
  %v1310 = vsel %vm636, %v1274, %v1276
  %v1311 = vsel %vm636, %v1276, %v1278
  %v1312 = vsel %vm636, %v1278, %v1280
  %v1313 = vsel %vm636, %v1280, %v1282
  %v1314 = vsel %vm636, %v1282, %v1284
  %v1340 = vsel %vm691, %v1186, 0
  %v1343 = vsel %vm98, %v1309, 0
  %v1346 = vsel %vm98, %v1310, 0
  %v1349 = vsel %vm98, %v1311, 0
  %v1352 = vsel %vm98, %v1312, 0
  %v1355 = vsel %vm98, %v1313, 0
  %v1358 = vsel %vm98, %v1314, 0
  %1360 = vmatpush.bf16.msra.mxu0 0
  %1361 = vmatpush.bf16.msra.mxu0 0
  %1362 = vmatpush.bf16.msra.mxu0 0
  %1363 = vmatpush.bf16.msra.mxu0 %v1343
  %1364 = vmatpush.bf16.msra.mxu0 %v1303
  %1365 = vmatpush.bf16.msra.mxu0 %v1297
  %1366 = vmatpush.bf16.msra.mxu0 %v1291
  %1367 = vmatpush.bf16.msra.mxu0 %v1285
  %1368 = vmatmul.bf16.gmra.mxu0 %v1340
  %v1369 = vpop.f32.mrf.mxu0
  %v1370 = vadd.f32 0.0, %v1369
  %v1371 = vpop.f32.mrf.mxu0
  %1372 = vdwg.mxu0
  %1373 = vmatpush.bf16.msra.mxu0 0
  %1374 = vmatpush.bf16.msra.mxu0 0
  %1375 = vmatpush.bf16.msra.mxu0 0
  %1376 = vmatpush.bf16.msra.mxu0 %v1346
  %1377 = vmatpush.bf16.msra.mxu0 %v1304
  %1378 = vmatpush.bf16.msra.mxu0 %v1298
  %1379 = vmatpush.bf16.msra.mxu0 %v1292
  %1380 = vmatpush.bf16.msra.mxu0 %v1286
  %1381 = vmatmul.bf16.gmra.mxu0 %v1340
  %v1382 = vpop.f32.mrf.mxu0
  %v1383 = vadd.f32 0.0, %v1382
  %v1384 = vpop.f32.mrf.mxu0
  %1385 = vdwg.mxu0
  %1386 = vmatpush.bf16.msra.mxu0 0
  %1387 = vmatpush.bf16.msra.mxu0 0
  %1388 = vmatpush.bf16.msra.mxu0 0
  %1389 = vmatpush.bf16.msra.mxu0 %v1349
  %1390 = vmatpush.bf16.msra.mxu0 %v1305
  %1391 = vmatpush.bf16.msra.mxu0 %v1299
  %1392 = vmatpush.bf16.msra.mxu0 %v1293
  %1393 = vmatpush.bf16.msra.mxu0 %v1287
  %1394 = vmatmul.bf16.gmra.mxu0 %v1340
  %v1395 = vpop.f32.mrf.mxu0
  %v1396 = vadd.f32 0.0, %v1395
  %v1397 = vpop.f32.mrf.mxu0
  %1398 = vdwg.mxu0
  %1399 = vmatpush.bf16.msra.mxu0 0
  %1400 = vmatpush.bf16.msra.mxu0 0
  %1401 = vmatpush.bf16.msra.mxu0 0
  %1402 = vmatpush.bf16.msra.mxu0 %v1352
  %1403 = vmatpush.bf16.msra.mxu0 %v1306
  %1404 = vmatpush.bf16.msra.mxu0 %v1300
  %1405 = vmatpush.bf16.msra.mxu0 %v1294
  %1406 = vmatpush.bf16.msra.mxu0 %v1288
  %1407 = vmatmul.bf16.gmra.mxu0 %v1340
  %v1408 = vpop.f32.mrf.mxu0
  %v1409 = vadd.f32 0.0, %v1408
  %v1410 = vpop.f32.mrf.mxu0
  %1411 = vdwg.mxu0
  %1412 = vmatpush.bf16.msra.mxu0 0
  %1413 = vmatpush.bf16.msra.mxu0 0
  %1414 = vmatpush.bf16.msra.mxu0 0
  %1415 = vmatpush.bf16.msra.mxu0 %v1355
  %1416 = vmatpush.bf16.msra.mxu0 %v1307
  %1417 = vmatpush.bf16.msra.mxu0 %v1301
  %1418 = vmatpush.bf16.msra.mxu0 %v1295
  %1419 = vmatpush.bf16.msra.mxu0 %v1289
  %1420 = vmatmul.bf16.gmra.mxu0 %v1340
  %v1421 = vpop.f32.mrf.mxu0
  %v1422 = vadd.f32 0.0, %v1421
  %v1423 = vpop.f32.mrf.mxu0
  %1424 = vdwg.mxu0
  %1425 = vmatpush.bf16.msra.mxu0 0
  %1426 = vmatpush.bf16.msra.mxu0 0
  %1427 = vmatpush.bf16.msra.mxu0 0
  %1428 = vmatpush.bf16.msra.mxu0 %v1358
  %1429 = vmatpush.bf16.msra.mxu0 %v1308
  %1430 = vmatpush.bf16.msra.mxu0 %v1302
  %1431 = vmatpush.bf16.msra.mxu0 %v1296
  %1432 = vmatpush.bf16.msra.mxu0 %v1290
  %1433 = vmatmul.bf16.gmra.mxu0 %v1340
  %v1434 = vpop.f32.mrf.mxu0
  %v1435 = vadd.f32 0.0, %v1434
  %v1436 = vpop.f32.mrf.mxu0
  %1437 = vdwg.mxu0
  %v1438 = vmul.f32 %v1370, %v196
  %v1439 = vmul.f32 %v1383, %v197
  %v1440 = vmul.f32 %v1396, %v198
  %v1441 = vmul.f32 %v1409, %v199
  %v1442 = vmul.f32 %v1422, %v200
  %v1443 = vmul.f32 %v1435, %v201
  %v1444 = vadd.f32 %v1438, %v1439
  %v1445 = vadd.f32 %v1444, %v1440
  %v1446 = vadd.f32 %v1445, %v1441
  %v1447 = vadd.f32 %v1446, %v1442
  %v1448 = vadd.f32 %v1447, %v1443
  %1449 = vadd.xlane.f32.xlu0 %v1448
  %v1450 = vpop.xlane.xlu0 %1449
  %v1451 = vmul.f32 %v1450, 0.001953125
  %v1452 = vmul.f32 %v1438, %v1370
  %v1453 = vmul.f32 %v1439, %v1383
  %v1454 = vmul.f32 %v1440, %v1396
  %v1455 = vmul.f32 %v1441, %v1409
  %v1456 = vmul.f32 %v1442, %v1422
  %v1457 = vmul.f32 %v1443, %v1435
  %v1458 = vadd.f32 %v1452, %v1453
  %v1459 = vadd.f32 %v1458, %v1454
  %v1460 = vadd.f32 %v1459, %v1455
  %v1461 = vadd.f32 %v1460, %v1456
  %v1462 = vadd.f32 %v1461, %v1457
  %1463 = vadd.xlane.f32.xlu0 %v1462
  %v1464 = vpop.xlane.xlu0 %1463
  %v1465 = vmul.f32 %v1464, 0.001953125
  %v1466 = vld [vmem:[%s8] sm:$0xff]
  %v1467 = vmul.f32 %v1451, %v1451
  %v1468 = vsub.f32 %v1465, %v1467
  %v1469 = vadd.f32 %v1468, 1e-05
  %v1470 = vrsqrt.pop %v1469
  %v1471 = vmul.f32 %v1470, %v1469
  %v1472 = vmul.f32 %v1471, %v1470
  %v1473 = vmul.f32 0.5, %v1472
  %v1474 = vsub.f32 1.5, %v1473
  %v1475 = vmul.f32 %v1470, %v1474
  %vm1476 = vweird.f32 %v1469
  %vm1477 = vweird.f32 %v1470
  %vm1478 = vmor %vm1476, %vm1477
  %v1479 = vsel %vm1478, %v1470, %v1475
  %v1480 = vmul.f32 %v1466, %v1479
  %v1481 = vld [vmem:[%s9] sm:$0xff]
  %v1482 = vmul.f32 %v1451, %v1480
  %v1483 = vsub.f32 %v1481, %v1482
  %1485 = vset.pattern.permute.xlu0 0
  %1486 = vperm.xlu0 %1485, %v1480
  %v1487 = vpop.permute.xlu0 %1486
  %v1489 = vmul.f32 %v1370, %v1487
  %v1490 = vmul.f32 %v1383, %v1487
  %v1491 = vmul.f32 %v1396, %v1487
  %v1492 = vmul.f32 %v1409, %v1487
  %v1493 = vmul.f32 %v1422, %v1487
  %v1494 = vmul.f32 %v1435, %v1487
  %1496 = vset.pattern.permute.xlu0 0
  %1497 = vperm.xlu0 %1496, %v1483
  %v1498 = vpop.permute.xlu0 %1497
  %v1500 = vadd.f32 %v1489, %v1498
  %v1501 = vadd.f32 %v1490, %v1498
  %v1502 = vadd.f32 %v1491, %v1498
  %v1503 = vadd.f32 %v1492, %v1498
  %v1504 = vadd.f32 %v1493, %v1498
  %v1505 = vadd.f32 %v1494, %v1498
  %v1506 = vld [vmem:[#allocation3] sm:$0xff]
  %v1507 = vld [vmem:[#allocation3 + $0x8] sm:$0xff]
  %v1508 = vld [vmem:[#allocation3 + $0x10] sm:$0xff]
  %v1509 = vld [vmem:[#allocation3 + $0x18] sm:$0xff]
  %v1510 = vld [vmem:[#allocation3 + $0x20] sm:$0xff]
  %v1511 = vld [vmem:[#allocation3 + $0x28] sm:$0xff]
  %v1512 = vadd.f32 %v1500, %v1506
  %v1513 = vadd.f32 %v1501, %v1507
  %v1514 = vadd.f32 %v1502, %v1508
  %v1515 = vadd.f32 %v1503, %v1509
  %v1516 = vadd.f32 %v1504, %v1510
  %v1517 = vadd.f32 %v1505, %v1511
  %v1518 = vmul.f32 %v1512, 0.01
  %v1519 = vmul.f32 %v1513, 0.01
  %v1520 = vmul.f32 %v1514, 0.01
  %v1521 = vmul.f32 %v1515, 0.01
  %v1522 = vmul.f32 %v1516, 0.01
  %v1523 = vmul.f32 %v1517, 0.01
  %v1524 = vmax.f32 %v1512, %v1518
  %v1525 = vmax.f32 %v1513, %v1519
  %v1526 = vmax.f32 %v1514, %v1520
  %v1527 = vmax.f32 %v1515, %v1521
  %v1528 = vmax.f32 %v1516, %v1522
  %v1529 = vmax.f32 %v1517, %v1523
  %v1530 = vmul.f32 %v1524, %v196
  %v1531 = vmul.f32 %v1525, %v197
  %v1532 = vmul.f32 %v1526, %v198
  %v1533 = vmul.f32 %v1527, %v199
  %v1534 = vmul.f32 %v1528, %v200
  %v1535 = vmul.f32 %v1529, %v201
  %v1536 = vpack.c.bf16 %v1531, %v1530
  %v1537 = vpack.c.bf16 %v1533, %v1532
  %v1538 = vpack.c.bf16 %v1535, %v1534
  %1539 = vst [vmem:[#allocation2 + $0x4] sm:$0xff] %v1536
  %1540 = vst [vmem:[#allocation2 + $0xc] sm:$0xff] %v1537
  %1541 = vst [vmem:[#allocation2 + $0x14] sm:$0xff] %v1538
  %v1542 = vld [vmem:[%s10] sm:$0xf]
  %v1543 = vld [vmem:[#allocation2 + $0x4] sm:$0xff]
  %v1544 = vld [vmem:[#allocation2 + $0xc] sm:$0xff]
  %v1545 = vld [vmem:[#allocation2 + $0x14] sm:$0xff]
  %v1546 = vld [vmem:[%s11] sm:$0xff]
  %1548 = vset.pattern.permute.xlu0 0
  %1549 = vperm.xlu0 %1548, %v1546
  %v1550 = vpop.permute.xlu0 %1549
  %v1555 = vunpack.c.l.b16 %v1543
  %v1556 = vunpack.c.h.b16 %v1543
  %v1557 = vunpack.c.l.b16 %v1544
  %v1558 = vunpack.c.h.b16 %v1544
  %v1559 = vunpack.c.l.b16 %v1545
  %v1560 = vunpack.c.h.b16 %v1545
  %v1561 = vpack.c.b16 %v1555, %v1555
  %v1562 = vpack.c.b16 %v1556, %v1556
  %v1563 = vpack.c.b16 %v1557, %v1557
  %v1564 = vpack.c.b16 %v1558, %v1558
  %v1565 = vpack.c.b16 %v1559, %v1559
  %v1566 = vpack.c.b16 %v1560, %v1560
  %v1568 = vsel %vm94, %v1542, 0
  %v1571 = vsel %vm98, %v1561, 0
  %v1574 = vsel %vm98, %v1562, 0
  %v1577 = vsel %vm98, %v1563, 0
  %v1580 = vsel %vm98, %v1564, 0
  %v1583 = vsel %vm98, %v1565, 0
  %v1586 = vsel %vm98, %v1566, 0
  %1588 = vmatpush.bf16.msra.mxu0 0
  %1589 = vmatpush.bf16.msra.mxu0 0
  %1590 = vmatpush.bf16.msra.mxu0 0
  %1591 = vmatpush.bf16.msra.mxu0 0
  %1592 = vmatpush.bf16.msra.mxu0 0
  %1593 = vmatpush.bf16.msra.mxu0 0
  %1594 = vmatpush.bf16.msra.mxu0 0
  %1595 = vmatpush.bf16.msra.mxu0 %v1571
  %1596 = vmatmul.bf16.gmra.mxu0 %v1568
  %v1597 = vpop.f32.mrf.mxu0
  %v1598 = vadd.f32 %v1550, %v1597
  %v1599 = vpop.f32.mrf.mxu0
  %1600 = vdwg.mxu0
  %1601 = vmatpush.bf16.msra.mxu0 0
  %1602 = vmatpush.bf16.msra.mxu0 0
  %1603 = vmatpush.bf16.msra.mxu0 0
  %1604 = vmatpush.bf16.msra.mxu0 0
  %1605 = vmatpush.bf16.msra.mxu0 0
  %1606 = vmatpush.bf16.msra.mxu0 0
  %1607 = vmatpush.bf16.msra.mxu0 0
  %1608 = vmatpush.bf16.msra.mxu0 %v1574
  %1609 = vmatmul.bf16.gmra.mxu0 %v1568
  %v1610 = vpop.f32.mrf.mxu0
  %v1611 = vadd.f32 %v1550, %v1610
  %v1612 = vpop.f32.mrf.mxu0
  %1613 = vdwg.mxu0
  %1614 = vmatpush.bf16.msra.mxu0 0
  %1615 = vmatpush.bf16.msra.mxu0 0
  %1616 = vmatpush.bf16.msra.mxu0 0
  %1617 = vmatpush.bf16.msra.mxu0 0
  %1618 = vmatpush.bf16.msra.mxu0 0
  %1619 = vmatpush.bf16.msra.mxu0 0
  %1620 = vmatpush.bf16.msra.mxu0 0
  %1621 = vmatpush.bf16.msra.mxu0 %v1577
  %1622 = vmatmul.bf16.gmra.mxu0 %v1568
  %v1623 = vpop.f32.mrf.mxu0
  %v1624 = vadd.f32 %v1550, %v1623
  %v1625 = vpop.f32.mrf.mxu0
  %1626 = vdwg.mxu0
  %1627 = vmatpush.bf16.msra.mxu0 0
  %1628 = vmatpush.bf16.msra.mxu0 0
  %1629 = vmatpush.bf16.msra.mxu0 0
  %1630 = vmatpush.bf16.msra.mxu0 0
  %1631 = vmatpush.bf16.msra.mxu0 0
  %1632 = vmatpush.bf16.msra.mxu0 0
  %1633 = vmatpush.bf16.msra.mxu0 0
  %1634 = vmatpush.bf16.msra.mxu0 %v1580
  %1635 = vmatmul.bf16.gmra.mxu0 %v1568
  %v1636 = vpop.f32.mrf.mxu0
  %v1637 = vadd.f32 %v1550, %v1636
  %v1638 = vpop.f32.mrf.mxu0
  %1639 = vdwg.mxu0
  %1640 = vmatpush.bf16.msra.mxu0 0
  %1641 = vmatpush.bf16.msra.mxu0 0
  %1642 = vmatpush.bf16.msra.mxu0 0
  %1643 = vmatpush.bf16.msra.mxu0 0
  %1644 = vmatpush.bf16.msra.mxu0 0
  %1645 = vmatpush.bf16.msra.mxu0 0
  %1646 = vmatpush.bf16.msra.mxu0 0
  %1647 = vmatpush.bf16.msra.mxu0 %v1583
  %1648 = vmatmul.bf16.gmra.mxu0 %v1568
  %v1649 = vpop.f32.mrf.mxu0
  %v1650 = vadd.f32 %v1550, %v1649
  %v1651 = vpop.f32.mrf.mxu0
  %1652 = vdwg.mxu0
  %1653 = vmatpush.bf16.msra.mxu0 0
  %1654 = vmatpush.bf16.msra.mxu0 0
  %1655 = vmatpush.bf16.msra.mxu0 0
  %1656 = vmatpush.bf16.msra.mxu0 0
  %1657 = vmatpush.bf16.msra.mxu0 0
  %1658 = vmatpush.bf16.msra.mxu0 0
  %1659 = vmatpush.bf16.msra.mxu0 0
  %1660 = vmatpush.bf16.msra.mxu0 %v1586
  %1661 = vmatmul.bf16.gmra.mxu0 %v1568
  %v1662 = vpop.f32.mrf.mxu0
  %v1663 = vadd.f32 %v1550, %v1662
  %v1664 = vpop.f32.mrf.mxu0
  %1665 = vdwg.mxu0
  %v1666 = vmul.f32 %v1598, %v196
  %v1667 = vmul.f32 %v1611, %v197
  %v1668 = vmul.f32 %v1624, %v198
  %v1669 = vmul.f32 %v1637, %v199
  %v1670 = vmul.f32 %v1650, %v200
  %v1671 = vmul.f32 %v1663, %v201
  %1672 = vst [vmem:[#allocation3] sm:$0xff] %v1666
  %1673 = vst [vmem:[#allocation3 + $0x8] sm:$0xff] %v1667
  %1674 = vst [vmem:[#allocation3 + $0x10] sm:$0xff] %v1668
  %1675 = vst [vmem:[#allocation3 + $0x18] sm:$0xff] %v1669
  %1676 = vst [vmem:[#allocation3 + $0x20] sm:$0xff] %v1670
  %1677 = vst [vmem:[#allocation3 + $0x28] sm:$0xff] %v1671
  %v1678 = vpack.c.bf16 %v1667, %v1666
  %v1679 = vpack.c.bf16 %v1669, %v1668
  %v1680 = vpack.c.bf16 %v1671, %v1670
  %1681 = vst [vmem:[#allocation2 + $0x4] sm:$0xff] %v1678
  %1682 = vst [vmem:[#allocation2 + $0xc] sm:$0xff] %v1679
  %1683 = vst [vmem:[#allocation2 + $0x14] sm:$0xff] %v1680
  %v1684 = vld [vmem:[#allocation2] sm:$0xff]
  %v1685 = vld [vmem:[#allocation2 + $0x8] sm:$0xff]
  %v1686 = vld [vmem:[#allocation2 + $0x10] sm:$0xff]
  %v1687 = vld [vmem:[#allocation2 + $0x18] sm:$0xf]
  %v1688 = vld [vmem:[#allocation2 + $0x4] sm:$0xff]
  %v1689 = vld [vmem:[#allocation2 + $0xc] sm:$0xff]
  %v1690 = vld [vmem:[#allocation2 + $0x14] sm:$0xff]
  %v1691 = vld [vmem:[#allocation2 + $0x4] sm:$0xff]
  %v1692 = vld [vmem:[#allocation2 + $0xc] sm:$0xff]
  %v1693 = vld [vmem:[#allocation2 + $0x14] sm:$0xff]
  %v1694 = vld [vmem:[#allocation2 + $0x1c] sm:$0xf]
  %v1699 = vunpack.c.l.b16 %v1684
  %v1700 = vunpack.c.h.b16 %v1684
  %v1701 = vunpack.c.l.b16 %v1685
  %v1702 = vunpack.c.h.b16 %v1685
  %v1703 = vunpack.c.l.b16 %v1686
  %v1704 = vunpack.c.h.b16 %v1686
  %v1705 = vunpack.c.l.b16 %v1687
  %v1706 = vpack.c.b16 %v1699, %v1699
  %v1707 = vpack.c.b16 %v1700, %v1700
  %v1708 = vpack.c.b16 %v1701, %v1701
  %v1709 = vpack.c.b16 %v1702, %v1702
  %v1710 = vpack.c.b16 %v1703, %v1703
  %v1711 = vpack.c.b16 %v1704, %v1704
  %v1712 = vpack.c.b16 %v1705, %v1705
  %1713 = vrot.lane.b32.xlu0 %v1706, 127
  %v1714 = vpop.permute.xlu0 %1713
  %1715 = vrot.lane.b32.xlu0 %v1707, 127
  %v1716 = vpop.permute.xlu0 %1715
  %1717 = vrot.lane.b32.xlu0 %v1708, 127
  %v1718 = vpop.permute.xlu0 %1717
  %1719 = vrot.lane.b32.xlu0 %v1709, 127
  %v1720 = vpop.permute.xlu0 %1719
  %1721 = vrot.lane.b32.xlu0 %v1710, 127
  %v1722 = vpop.permute.xlu0 %1721
  %1723 = vrot.lane.b32.xlu0 %v1711, 127
  %v1724 = vpop.permute.xlu0 %1723
  %1725 = vrot.lane.b32.xlu0 %v1712, 127
  %v1726 = vpop.permute.xlu0 %1725
  %v1727 = vsel %vm269, %v1714, %v1716
  %v1728 = vsel %vm269, %v1716, %v1718
  %v1729 = vsel %vm269, %v1718, %v1720
  %v1730 = vsel %vm269, %v1720, %v1722
  %v1731 = vsel %vm269, %v1722, %v1724
  %v1732 = vsel %vm269, %v1724, %v1726
  %1733 = vrot.lane.b32.xlu0 %v1706, 126
  %v1734 = vpop.permute.xlu0 %1733
  %1735 = vrot.lane.b32.xlu0 %v1707, 126
  %v1736 = vpop.permute.xlu0 %1735
  %1737 = vrot.lane.b32.xlu0 %v1708, 126
  %v1738 = vpop.permute.xlu0 %1737
  %1739 = vrot.lane.b32.xlu0 %v1709, 126
  %v1740 = vpop.permute.xlu0 %1739
  %1741 = vrot.lane.b32.xlu0 %v1710, 126
  %v1742 = vpop.permute.xlu0 %1741
  %1743 = vrot.lane.b32.xlu0 %v1711, 126
  %v1744 = vpop.permute.xlu0 %1743
  %1745 = vrot.lane.b32.xlu0 %v1712, 126
  %v1746 = vpop.permute.xlu0 %1745
  %v1747 = vsel %vm290, %v1734, %v1736
  %v1748 = vsel %vm290, %v1736, %v1738
  %v1749 = vsel %vm290, %v1738, %v1740
  %v1750 = vsel %vm290, %v1740, %v1742
  %v1751 = vsel %vm290, %v1742, %v1744
  %v1752 = vsel %vm290, %v1744, %v1746
  %1753 = vrot.lane.b32.xlu0 %v1706, 110
  %v1754 = vpop.permute.xlu0 %1753
  %1755 = vrot.lane.b32.xlu0 %v1707, 110
  %v1756 = vpop.permute.xlu0 %1755
  %1757 = vrot.lane.b32.xlu0 %v1708, 110
  %v1758 = vpop.permute.xlu0 %1757
  %1759 = vrot.lane.b32.xlu0 %v1709, 110
  %v1760 = vpop.permute.xlu0 %1759
  %1761 = vrot.lane.b32.xlu0 %v1710, 110
  %v1762 = vpop.permute.xlu0 %1761
  %1763 = vrot.lane.b32.xlu0 %v1711, 110
  %v1764 = vpop.permute.xlu0 %1763
  %1765 = vrot.lane.b32.xlu0 %v1712, 110
  %v1766 = vpop.permute.xlu0 %1765
  %v1767 = vsel %vm311, %v1754, %v1756
  %v1768 = vsel %vm311, %v1756, %v1758
  %v1769 = vsel %vm311, %v1758, %v1760
  %v1770 = vsel %vm311, %v1760, %v1762
  %v1771 = vsel %vm311, %v1762, %v1764
  %v1772 = vsel %vm311, %v1764, %v1766
  %v1776 = vunpack.c.l.b16 %v1688
  %v1777 = vunpack.c.h.b16 %v1688
  %v1778 = vunpack.c.l.b16 %v1689
  %v1779 = vunpack.c.h.b16 %v1689
  %v1780 = vunpack.c.l.b16 %v1690
  %v1781 = vunpack.c.h.b16 %v1690
  %v1782 = vpack.c.b16 %v1776, %v1776
  %v1783 = vpack.c.b16 %v1777, %v1777
  %v1784 = vpack.c.b16 %v1778, %v1778
  %v1785 = vpack.c.b16 %v1779, %v1779
  %v1786 = vpack.c.b16 %v1780, %v1780
  %v1787 = vpack.c.b16 %v1781, %v1781
  %1788 = vrot.lane.b32.xlu0 %v1782, 109
  %v1789 = vpop.permute.xlu0 %1788
  %1790 = vrot.lane.b32.xlu0 %v1783, 109
  %v1791 = vpop.permute.xlu0 %1790
  %1792 = vrot.lane.b32.xlu0 %v1784, 109
  %v1793 = vpop.permute.xlu0 %1792
  %1794 = vrot.lane.b32.xlu0 %v1785, 109
  %v1795 = vpop.permute.xlu0 %1794
  %1796 = vrot.lane.b32.xlu0 %v1786, 109
  %v1797 = vpop.permute.xlu0 %1796
  %1798 = vrot.lane.b32.xlu0 %v1787, 109
  %v1799 = vpop.permute.xlu0 %1798
  %v1800 = vsel %vm345, %v1789, %v1791
  %v1801 = vsel %vm345, %v1791, %v1793
  %v1802 = vsel %vm345, %v1793, %v1795
  %v1803 = vsel %vm345, %v1795, %v1797
  %v1804 = vsel %vm345, %v1797, %v1799
  %v1809 = vunpack.c.l.b16 %v1691
  %v1810 = vunpack.c.h.b16 %v1691
  %v1811 = vunpack.c.l.b16 %v1692
  %v1812 = vunpack.c.h.b16 %v1692
  %v1813 = vunpack.c.l.b16 %v1693
  %v1814 = vunpack.c.h.b16 %v1693
  %v1815 = vunpack.c.l.b16 %v1694
  %v1816 = vpack.c.b16 %v1809, %v1809
  %v1817 = vpack.c.b16 %v1810, %v1810
  %v1818 = vpack.c.b16 %v1811, %v1811
  %v1819 = vpack.c.b16 %v1812, %v1812
  %v1820 = vpack.c.b16 %v1813, %v1813
  %v1821 = vpack.c.b16 %v1814, %v1814
  %v1822 = vpack.c.b16 %v1815, %v1815
  %1823 = vrot.lane.b32.xlu0 %v1816, 108
  %v1824 = vpop.permute.xlu0 %1823
  %1825 = vrot.lane.b32.xlu0 %v1817, 108
  %v1826 = vpop.permute.xlu0 %1825
  %1827 = vrot.lane.b32.xlu0 %v1818, 108
  %v1828 = vpop.permute.xlu0 %1827
  %1829 = vrot.lane.b32.xlu0 %v1819, 108
  %v1830 = vpop.permute.xlu0 %1829
  %1831 = vrot.lane.b32.xlu0 %v1820, 108
  %v1832 = vpop.permute.xlu0 %1831
  %1833 = vrot.lane.b32.xlu0 %v1821, 108
  %v1834 = vpop.permute.xlu0 %1833
  %1835 = vrot.lane.b32.xlu0 %v1822, 108
  %v1836 = vpop.permute.xlu0 %1835
  %v1837 = vsel %vm383, %v1824, %v1826
  %v1838 = vsel %vm383, %v1826, %v1828
  %v1839 = vsel %vm383, %v1828, %v1830
  %v1840 = vsel %vm383, %v1830, %v1832
  %v1841 = vsel %vm383, %v1832, %v1834
  %v1842 = vsel %vm383, %v1834, %v1836
  %1843 = vrot.lane.b32.xlu0 %v1816, 92
  %v1844 = vpop.permute.xlu0 %1843
  %1845 = vrot.lane.b32.xlu0 %v1817, 92
  %v1846 = vpop.permute.xlu0 %1845
  %1847 = vrot.lane.b32.xlu0 %v1818, 92
  %v1848 = vpop.permute.xlu0 %1847
  %1849 = vrot.lane.b32.xlu0 %v1819, 92
  %v1850 = vpop.permute.xlu0 %1849
  %1851 = vrot.lane.b32.xlu0 %v1820, 92
  %v1852 = vpop.permute.xlu0 %1851
  %1853 = vrot.lane.b32.xlu0 %v1821, 92
  %v1854 = vpop.permute.xlu0 %1853
  %1855 = vrot.lane.b32.xlu0 %v1822, 92
  %v1856 = vpop.permute.xlu0 %1855
  %v1857 = vsel %vm404, %v1844, %v1846
  %v1858 = vsel %vm404, %v1846, %v1848
  %v1859 = vsel %vm404, %v1848, %v1850
  %v1860 = vsel %vm404, %v1850, %v1852
  %v1861 = vsel %vm404, %v1852, %v1854
  %v1862 = vsel %vm404, %v1854, %v1856
  %1863 = vrot.lane.b32.xlu0 %v1816, 91
  %v1864 = vpop.permute.xlu0 %1863
  %1865 = vrot.lane.b32.xlu0 %v1817, 91
  %v1866 = vpop.permute.xlu0 %1865
  %1867 = vrot.lane.b32.xlu0 %v1818, 91
  %v1868 = vpop.permute.xlu0 %1867
  %1869 = vrot.lane.b32.xlu0 %v1819, 91
  %v1870 = vpop.permute.xlu0 %1869
  %1871 = vrot.lane.b32.xlu0 %v1820, 91
  %v1872 = vpop.permute.xlu0 %1871
  %1873 = vrot.lane.b32.xlu0 %v1821, 91
  %v1874 = vpop.permute.xlu0 %1873
  %1875 = vrot.lane.b32.xlu0 %v1822, 91
  %v1876 = vpop.permute.xlu0 %1875
  %v1877 = vsel %vm425, %v1864, %v1866
  %v1878 = vsel %vm425, %v1866, %v1868
  %v1879 = vsel %vm425, %v1868, %v1870
  %v1880 = vsel %vm425, %v1870, %v1872
  %v1881 = vsel %vm425, %v1872, %v1874
  %v1882 = vsel %vm425, %v1874, %v1876
  %1883 = vrot.lane.b32.xlu0 %v1816, 90
  %v1884 = vpop.permute.xlu0 %1883
  %1885 = vrot.lane.b32.xlu0 %v1817, 90
  %v1886 = vpop.permute.xlu0 %1885
  %1887 = vrot.lane.b32.xlu0 %v1818, 90
  %v1888 = vpop.permute.xlu0 %1887
  %1889 = vrot.lane.b32.xlu0 %v1819, 90
  %v1890 = vpop.permute.xlu0 %1889
  %1891 = vrot.lane.b32.xlu0 %v1820, 90
  %v1892 = vpop.permute.xlu0 %1891
  %1893 = vrot.lane.b32.xlu0 %v1821, 90
  %v1894 = vpop.permute.xlu0 %1893
  %1895 = vrot.lane.b32.xlu0 %v1822, 90
  %v1896 = vpop.permute.xlu0 %1895
  %v1897 = vsel %vm446, %v1884, %v1886
  %v1898 = vsel %vm446, %v1886, %v1888
  %v1899 = vsel %vm446, %v1888, %v1890
  %v1900 = vsel %vm446, %v1890, %v1892
  %v1901 = vsel %vm446, %v1892, %v1894
  %v1902 = vsel %vm446, %v1894, %v1896
  %v1905 = vsel %vm98, %v1706, %v1727
  %v1908 = vsel %vm98, %v1707, %v1728
  %v1911 = vsel %vm98, %v1708, %v1729
  %v1914 = vsel %vm98, %v1709, %v1730
  %v1917 = vsel %vm98, %v1710, %v1731
  %v1920 = vsel %vm98, %v1711, %v1732
  %v1923 = vsel %vm98, %v1712, %v1726
  %v1926 = vsel %vm98, %v1747, %v1767
  %v1929 = vsel %vm98, %v1748, %v1768
  %v1932 = vsel %vm98, %v1749, %v1769
  %v1935 = vsel %vm98, %v1750, %v1770
  %v1938 = vsel %vm98, %v1751, %v1771
  %v1941 = vsel %vm98, %v1752, %v1772
  %v1944 = vsel %vm98, %v1746, %v1766
  %v1947 = vsel %vm98, %v1789, %v1824
  %v1950 = vsel %vm98, %v1800, %v1837
  %v1953 = vsel %vm98, %v1801, %v1838
  %v1956 = vsel %vm98, %v1802, %v1839
  %v1959 = vsel %vm98, %v1803, %v1840
  %v1962 = vsel %vm98, %v1804, %v1841
  %v1965 = vsel %vm98, %v1799, %v1842
  %v1968 = vsel %vm98, %v1844, %v1864
  %v1971 = vsel %vm98, %v1857, %v1877
  %v1974 = vsel %vm98, %v1858, %v1878
  %v1977 = vsel %vm98, %v1859, %v1879
  %v1980 = vsel %vm98, %v1860, %v1880
  %v1983 = vsel %vm98, %v1861, %v1881
  %v1986 = vsel %vm98, %v1862, %v1882
  %v1987 = vld [vmem:[%s12] sm:$0xf]
  %2016 = vrot.lane.b32.xlu0 %v1905, 19
  %v2017 = vpop.permute.xlu0 %2016
  %2018 = vrot.lane.b32.xlu0 %v1908, 19
  %v2019 = vpop.permute.xlu0 %2018
  %2020 = vrot.lane.b32.xlu0 %v1911, 19
  %v2021 = vpop.permute.xlu0 %2020
  %2022 = vrot.lane.b32.xlu0 %v1914, 19
  %v2023 = vpop.permute.xlu0 %2022
  %2024 = vrot.lane.b32.xlu0 %v1917, 19
  %v2025 = vpop.permute.xlu0 %2024
  %2026 = vrot.lane.b32.xlu0 %v1920, 19
  %v2027 = vpop.permute.xlu0 %2026
  %2028 = vrot.lane.b32.xlu0 %v1923, 19
  %v2029 = vpop.permute.xlu0 %2028
  %2030 = vrot.lane.b32.xlu0 %v1926, 19
  %v2031 = vpop.permute.xlu0 %2030
  %2032 = vrot.lane.b32.xlu0 %v1929, 19
  %v2033 = vpop.permute.xlu0 %2032
  %2034 = vrot.lane.b32.xlu0 %v1932, 19
  %v2035 = vpop.permute.xlu0 %2034
  %2036 = vrot.lane.b32.xlu0 %v1935, 19
  %v2037 = vpop.permute.xlu0 %2036
  %2038 = vrot.lane.b32.xlu0 %v1938, 19
  %v2039 = vpop.permute.xlu0 %2038
  %2040 = vrot.lane.b32.xlu0 %v1941, 19
  %v2041 = vpop.permute.xlu0 %2040
  %2042 = vrot.lane.b32.xlu0 %v1944, 19
  %v2043 = vpop.permute.xlu0 %2042
  %2044 = vrot.lane.b32.xlu0 %v1947, 19
  %v2045 = vpop.permute.xlu0 %2044
  %2046 = vrot.lane.b32.xlu0 %v1950, 19
  %v2047 = vpop.permute.xlu0 %2046
  %2048 = vrot.lane.b32.xlu0 %v1953, 19
  %v2049 = vpop.permute.xlu0 %2048
  %2050 = vrot.lane.b32.xlu0 %v1956, 19
  %v2051 = vpop.permute.xlu0 %2050
  %2052 = vrot.lane.b32.xlu0 %v1959, 19
  %v2053 = vpop.permute.xlu0 %2052
  %2054 = vrot.lane.b32.xlu0 %v1962, 19
  %v2055 = vpop.permute.xlu0 %2054
  %2056 = vrot.lane.b32.xlu0 %v1965, 19
  %v2057 = vpop.permute.xlu0 %2056
  %2058 = vrot.lane.b32.xlu0 %v1968, 19
  %v2059 = vpop.permute.xlu0 %2058
  %2060 = vrot.lane.b32.xlu0 %v1971, 19
  %v2061 = vpop.permute.xlu0 %2060
  %2062 = vrot.lane.b32.xlu0 %v1974, 19
  %v2063 = vpop.permute.xlu0 %2062
  %2064 = vrot.lane.b32.xlu0 %v1977, 19
  %v2065 = vpop.permute.xlu0 %2064
  %2066 = vrot.lane.b32.xlu0 %v1980, 19
  %v2067 = vpop.permute.xlu0 %2066
  %2068 = vrot.lane.b32.xlu0 %v1983, 19
  %v2069 = vpop.permute.xlu0 %2068
  %2070 = vrot.lane.b32.xlu0 %v1986, 19
  %v2071 = vpop.permute.xlu0 %2070
  %2072 = vrot.lane.b32.xlu0 %v1884, 19
  %v2073 = vpop.permute.xlu0 %2072
  %2074 = vrot.lane.b32.xlu0 %v1897, 19
  %v2075 = vpop.permute.xlu0 %2074
  %2076 = vrot.lane.b32.xlu0 %v1898, 19
  %v2077 = vpop.permute.xlu0 %2076
  %2078 = vrot.lane.b32.xlu0 %v1899, 19
  %v2079 = vpop.permute.xlu0 %2078
  %2080 = vrot.lane.b32.xlu0 %v1900, 19
  %v2081 = vpop.permute.xlu0 %2080
  %2082 = vrot.lane.b32.xlu0 %v1901, 19
  %v2083 = vpop.permute.xlu0 %2082
  %2084 = vrot.lane.b32.xlu0 %v1902, 19
  %v2085 = vpop.permute.xlu0 %2084
  %v2086 = vsel %vm636, %v2017, %v2019
  %v2087 = vsel %vm636, %v2019, %v2021
  %v2088 = vsel %vm636, %v2021, %v2023
  %v2089 = vsel %vm636, %v2023, %v2025
  %v2090 = vsel %vm636, %v2025, %v2027
  %v2091 = vsel %vm636, %v2027, %v2029
  %v2092 = vsel %vm636, %v2031, %v2033
  %v2093 = vsel %vm636, %v2033, %v2035
  %v2094 = vsel %vm636, %v2035, %v2037
  %v2095 = vsel %vm636, %v2037, %v2039
  %v2096 = vsel %vm636, %v2039, %v2041
  %v2097 = vsel %vm636, %v2041, %v2043
  %v2098 = vsel %vm636, %v2045, %v2047
  %v2099 = vsel %vm636, %v2047, %v2049
  %v2100 = vsel %vm636, %v2049, %v2051
  %v2101 = vsel %vm636, %v2051, %v2053
  %v2102 = vsel %vm636, %v2053, %v2055
  %v2103 = vsel %vm636, %v2055, %v2057
  %v2104 = vsel %vm636, %v2059, %v2061
  %v2105 = vsel %vm636, %v2061, %v2063
  %v2106 = vsel %vm636, %v2063, %v2065
  %v2107 = vsel %vm636, %v2065, %v2067
  %v2108 = vsel %vm636, %v2067, %v2069
  %v2109 = vsel %vm636, %v2069, %v2071
  %v2110 = vsel %vm636, %v2073, %v2075
  %v2111 = vsel %vm636, %v2075, %v2077
  %v2112 = vsel %vm636, %v2077, %v2079
  %v2113 = vsel %vm636, %v2079, %v2081
  %v2114 = vsel %vm636, %v2081, %v2083
  %v2115 = vsel %vm636, %v2083, %v2085
  %v2141 = vsel %vm691, %v1987, 0
  %v2144 = vsel %vm98, %v2110, 0
  %v2147 = vsel %vm98, %v2111, 0
  %v2150 = vsel %vm98, %v2112, 0
  %v2153 = vsel %vm98, %v2113, 0
  %v2156 = vsel %vm98, %v2114, 0
  %v2159 = vsel %vm98, %v2115, 0
  %2161 = vmatpush.bf16.msra.mxu0 0
  %2162 = vmatpush.bf16.msra.mxu0 0
  %2163 = vmatpush.bf16.msra.mxu0 0
  %2164 = vmatpush.bf16.msra.mxu0 %v2144
  %2165 = vmatpush.bf16.msra.mxu0 %v2104
  %2166 = vmatpush.bf16.msra.mxu0 %v2098
  %2167 = vmatpush.bf16.msra.mxu0 %v2092
  %2168 = vmatpush.bf16.msra.mxu0 %v2086
  %2169 = vmatmul.bf16.gmra.mxu0 %v2141
  %v2170 = vpop.f32.mrf.mxu0
  %v2171 = vadd.f32 0.0, %v2170
  %v2172 = vpop.f32.mrf.mxu0
  %2173 = vdwg.mxu0
  %2174 = vmatpush.bf16.msra.mxu0 0
  %2175 = vmatpush.bf16.msra.mxu0 0
  %2176 = vmatpush.bf16.msra.mxu0 0
  %2177 = vmatpush.bf16.msra.mxu0 %v2147
  %2178 = vmatpush.bf16.msra.mxu0 %v2105
  %2179 = vmatpush.bf16.msra.mxu0 %v2099
  %2180 = vmatpush.bf16.msra.mxu0 %v2093
  %2181 = vmatpush.bf16.msra.mxu0 %v2087
  %2182 = vmatmul.bf16.gmra.mxu0 %v2141
  %v2183 = vpop.f32.mrf.mxu0
  %v2184 = vadd.f32 0.0, %v2183
  %v2185 = vpop.f32.mrf.mxu0
  %2186 = vdwg.mxu0
  %2187 = vmatpush.bf16.msra.mxu0 0
  %2188 = vmatpush.bf16.msra.mxu0 0
  %2189 = vmatpush.bf16.msra.mxu0 0
  %2190 = vmatpush.bf16.msra.mxu0 %v2150
  %2191 = vmatpush.bf16.msra.mxu0 %v2106
  %2192 = vmatpush.bf16.msra.mxu0 %v2100
  %2193 = vmatpush.bf16.msra.mxu0 %v2094
  %2194 = vmatpush.bf16.msra.mxu0 %v2088
  %2195 = vmatmul.bf16.gmra.mxu0 %v2141
  %v2196 = vpop.f32.mrf.mxu0
  %v2197 = vadd.f32 0.0, %v2196
  %v2198 = vpop.f32.mrf.mxu0
  %2199 = vdwg.mxu0
  %2200 = vmatpush.bf16.msra.mxu0 0
  %2201 = vmatpush.bf16.msra.mxu0 0
  %2202 = vmatpush.bf16.msra.mxu0 0
  %2203 = vmatpush.bf16.msra.mxu0 %v2153
  %2204 = vmatpush.bf16.msra.mxu0 %v2107
  %2205 = vmatpush.bf16.msra.mxu0 %v2101
  %2206 = vmatpush.bf16.msra.mxu0 %v2095
  %2207 = vmatpush.bf16.msra.mxu0 %v2089
  %2208 = vmatmul.bf16.gmra.mxu0 %v2141
  %v2209 = vpop.f32.mrf.mxu0
  %v2210 = vadd.f32 0.0, %v2209
  %v2211 = vpop.f32.mrf.mxu0
  %2212 = vdwg.mxu0
  %2213 = vmatpush.bf16.msra.mxu0 0
  %2214 = vmatpush.bf16.msra.mxu0 0
  %2215 = vmatpush.bf16.msra.mxu0 0
  %2216 = vmatpush.bf16.msra.mxu0 %v2156
  %2217 = vmatpush.bf16.msra.mxu0 %v2108
  %2218 = vmatpush.bf16.msra.mxu0 %v2102
  %2219 = vmatpush.bf16.msra.mxu0 %v2096
  %2220 = vmatpush.bf16.msra.mxu0 %v2090
  %2221 = vmatmul.bf16.gmra.mxu0 %v2141
  %v2222 = vpop.f32.mrf.mxu0
  %v2223 = vadd.f32 0.0, %v2222
  %v2224 = vpop.f32.mrf.mxu0
  %2225 = vdwg.mxu0
  %2226 = vmatpush.bf16.msra.mxu0 0
  %2227 = vmatpush.bf16.msra.mxu0 0
  %2228 = vmatpush.bf16.msra.mxu0 0
  %2229 = vmatpush.bf16.msra.mxu0 %v2159
  %2230 = vmatpush.bf16.msra.mxu0 %v2109
  %2231 = vmatpush.bf16.msra.mxu0 %v2103
  %2232 = vmatpush.bf16.msra.mxu0 %v2097
  %2233 = vmatpush.bf16.msra.mxu0 %v2091
  %2234 = vmatmul.bf16.gmra.mxu0 %v2141
  %v2235 = vpop.f32.mrf.mxu0
  %v2236 = vadd.f32 0.0, %v2235
  %v2237 = vpop.f32.mrf.mxu0
  %2238 = vdwg.mxu0
  %v2239 = vmul.f32 %v2171, %v196
  %v2240 = vmul.f32 %v2184, %v197
  %v2241 = vmul.f32 %v2197, %v198
  %v2242 = vmul.f32 %v2210, %v199
  %v2243 = vmul.f32 %v2223, %v200
  %v2244 = vmul.f32 %v2236, %v201
  %v2245 = vadd.f32 %v2239, %v2240
  %v2246 = vadd.f32 %v2245, %v2241
  %v2247 = vadd.f32 %v2246, %v2242
  %v2248 = vadd.f32 %v2247, %v2243
  %v2249 = vadd.f32 %v2248, %v2244
  %2250 = vadd.xlane.f32.xlu0 %v2249
  %v2251 = vpop.xlane.xlu0 %2250
  %v2252 = vmul.f32 %v2251, 0.001953125
  %v2253 = vmul.f32 %v2239, %v2171
  %v2254 = vmul.f32 %v2240, %v2184
  %v2255 = vmul.f32 %v2241, %v2197
  %v2256 = vmul.f32 %v2242, %v2210
  %v2257 = vmul.f32 %v2243, %v2223
  %v2258 = vmul.f32 %v2244, %v2236
  %v2259 = vadd.f32 %v2253, %v2254
  %v2260 = vadd.f32 %v2259, %v2255
  %v2261 = vadd.f32 %v2260, %v2256
  %v2262 = vadd.f32 %v2261, %v2257
  %v2263 = vadd.f32 %v2262, %v2258
  %2264 = vadd.xlane.f32.xlu0 %v2263
  %v2265 = vpop.xlane.xlu0 %2264
  %v2266 = vmul.f32 %v2265, 0.001953125
  %v2267 = vld [vmem:[%s13] sm:$0xff]
  %v2268 = vmul.f32 %v2252, %v2252
  %v2269 = vsub.f32 %v2266, %v2268
  %v2270 = vadd.f32 %v2269, 1e-05
  %v2271 = vrsqrt.pop %v2270
  %v2272 = vmul.f32 %v2271, %v2270
  %v2273 = vmul.f32 %v2272, %v2271
  %v2274 = vmul.f32 0.5, %v2273
  %v2275 = vsub.f32 1.5, %v2274
  %v2276 = vmul.f32 %v2271, %v2275
  %vm2277 = vweird.f32 %v2270
  %vm2278 = vweird.f32 %v2271
  %vm2279 = vmor %vm2277, %vm2278
  %v2280 = vsel %vm2279, %v2271, %v2276
  %v2281 = vmul.f32 %v2267, %v2280
  %v2282 = vld [vmem:[%s14] sm:$0xff]
  %v2283 = vmul.f32 %v2252, %v2281
  %v2284 = vsub.f32 %v2282, %v2283
  %2286 = vset.pattern.permute.xlu0 0
  %2287 = vperm.xlu0 %2286, %v2281
  %v2288 = vpop.permute.xlu0 %2287
  %v2290 = vmul.f32 %v2171, %v2288
  %v2291 = vmul.f32 %v2184, %v2288
  %v2292 = vmul.f32 %v2197, %v2288
  %v2293 = vmul.f32 %v2210, %v2288
  %v2294 = vmul.f32 %v2223, %v2288
  %v2295 = vmul.f32 %v2236, %v2288
  %2297 = vset.pattern.permute.xlu0 0
  %2298 = vperm.xlu0 %2297, %v2284
  %v2299 = vpop.permute.xlu0 %2298
  %v2301 = vadd.f32 %v2290, %v2299
  %v2302 = vadd.f32 %v2291, %v2299
  %v2303 = vadd.f32 %v2292, %v2299
  %v2304 = vadd.f32 %v2293, %v2299
  %v2305 = vadd.f32 %v2294, %v2299
  %v2306 = vadd.f32 %v2295, %v2299
  %v2307 = vmul.f32 %v2301, 0.01
  %v2308 = vmul.f32 %v2302, 0.01
  %v2309 = vmul.f32 %v2303, 0.01
  %v2310 = vmul.f32 %v2304, 0.01
  %v2311 = vmul.f32 %v2305, 0.01
  %v2312 = vmul.f32 %v2306, 0.01
  %v2313 = vmax.f32 %v2301, %v2307
  %v2314 = vmax.f32 %v2302, %v2308
  %v2315 = vmax.f32 %v2303, %v2309
  %v2316 = vmax.f32 %v2304, %v2310
  %v2317 = vmax.f32 %v2305, %v2311
  %v2318 = vmax.f32 %v2306, %v2312
  %v2319 = vmul.f32 %v2313, %v196
  %v2320 = vmul.f32 %v2314, %v197
  %v2321 = vmul.f32 %v2315, %v198
  %v2322 = vmul.f32 %v2316, %v199
  %v2323 = vmul.f32 %v2317, %v200
  %v2324 = vmul.f32 %v2318, %v201
  %v2325 = vpack.c.bf16 %v2320, %v2319
  %v2326 = vpack.c.bf16 %v2322, %v2321
  %v2327 = vpack.c.bf16 %v2324, %v2323
  %2328 = vst [vmem:[#allocation2 + $0x4] sm:$0xff] %v2325
  %2329 = vst [vmem:[#allocation2 + $0xc] sm:$0xff] %v2326
  %2330 = vst [vmem:[#allocation2 + $0x14] sm:$0xff] %v2327
  %v2331 = vld [vmem:[#allocation2] sm:$0xff]
  %v2332 = vld [vmem:[#allocation2 + $0x8] sm:$0xff]
  %v2333 = vld [vmem:[#allocation2 + $0x10] sm:$0xff]
  %v2334 = vld [vmem:[#allocation2 + $0x18] sm:$0xf]
  %v2335 = vld [vmem:[#allocation2 + $0x4] sm:$0xff]
  %v2336 = vld [vmem:[#allocation2 + $0xc] sm:$0xff]
  %v2337 = vld [vmem:[#allocation2 + $0x14] sm:$0xff]
  %v2338 = vld [vmem:[#allocation2 + $0x4] sm:$0xff]
  %v2339 = vld [vmem:[#allocation2 + $0xc] sm:$0xff]
  %v2340 = vld [vmem:[#allocation2 + $0x14] sm:$0xff]
  %v2341 = vld [vmem:[#allocation2 + $0x1c] sm:$0xf]
  %v2346 = vunpack.c.l.b16 %v2331
  %v2347 = vunpack.c.h.b16 %v2331
  %v2348 = vunpack.c.l.b16 %v2332
  %v2349 = vunpack.c.h.b16 %v2332
  %v2350 = vunpack.c.l.b16 %v2333
  %v2351 = vunpack.c.h.b16 %v2333
  %v2352 = vunpack.c.l.b16 %v2334
  %v2353 = vpack.c.b16 %v2346, %v2346
  %v2354 = vpack.c.b16 %v2347, %v2347
  %v2355 = vpack.c.b16 %v2348, %v2348
  %v2356 = vpack.c.b16 %v2349, %v2349
  %v2357 = vpack.c.b16 %v2350, %v2350
  %v2358 = vpack.c.b16 %v2351, %v2351
  %v2359 = vpack.c.b16 %v2352, %v2352
  %2360 = vrot.lane.b32.xlu0 %v2353, 127
  %v2361 = vpop.permute.xlu0 %2360
  %2362 = vrot.lane.b32.xlu0 %v2354, 127
  %v2363 = vpop.permute.xlu0 %2362
  %2364 = vrot.lane.b32.xlu0 %v2355, 127
  %v2365 = vpop.permute.xlu0 %2364
  %2366 = vrot.lane.b32.xlu0 %v2356, 127
  %v2367 = vpop.permute.xlu0 %2366
  %2368 = vrot.lane.b32.xlu0 %v2357, 127
  %v2369 = vpop.permute.xlu0 %2368
  %2370 = vrot.lane.b32.xlu0 %v2358, 127
  %v2371 = vpop.permute.xlu0 %2370
  %2372 = vrot.lane.b32.xlu0 %v2359, 127
  %v2373 = vpop.permute.xlu0 %2372
  %v2374 = vsel %vm269, %v2361, %v2363
  %v2375 = vsel %vm269, %v2363, %v2365
  %v2376 = vsel %vm269, %v2365, %v2367
  %v2377 = vsel %vm269, %v2367, %v2369
  %v2378 = vsel %vm269, %v2369, %v2371
  %v2379 = vsel %vm269, %v2371, %v2373
  %2380 = vrot.lane.b32.xlu0 %v2353, 126
  %v2381 = vpop.permute.xlu0 %2380
  %2382 = vrot.lane.b32.xlu0 %v2354, 126
  %v2383 = vpop.permute.xlu0 %2382
  %2384 = vrot.lane.b32.xlu0 %v2355, 126
  %v2385 = vpop.permute.xlu0 %2384
  %2386 = vrot.lane.b32.xlu0 %v2356, 126
  %v2387 = vpop.permute.xlu0 %2386
  %2388 = vrot.lane.b32.xlu0 %v2357, 126
  %v2389 = vpop.permute.xlu0 %2388
  %2390 = vrot.lane.b32.xlu0 %v2358, 126
  %v2391 = vpop.permute.xlu0 %2390
  %2392 = vrot.lane.b32.xlu0 %v2359, 126
  %v2393 = vpop.permute.xlu0 %2392
  %v2394 = vsel %vm290, %v2381, %v2383
  %v2395 = vsel %vm290, %v2383, %v2385
  %v2396 = vsel %vm290, %v2385, %v2387
  %v2397 = vsel %vm290, %v2387, %v2389
  %v2398 = vsel %vm290, %v2389, %v2391
  %v2399 = vsel %vm290, %v2391, %v2393
  %2400 = vrot.lane.b32.xlu0 %v2353, 110
  %v2401 = vpop.permute.xlu0 %2400
  %2402 = vrot.lane.b32.xlu0 %v2354, 110
  %v2403 = vpop.permute.xlu0 %2402
  %2404 = vrot.lane.b32.xlu0 %v2355, 110
  %v2405 = vpop.permute.xlu0 %2404
  %2406 = vrot.lane.b32.xlu0 %v2356, 110
  %v2407 = vpop.permute.xlu0 %2406
  %2408 = vrot.lane.b32.xlu0 %v2357, 110
  %v2409 = vpop.permute.xlu0 %2408
  %2410 = vrot.lane.b32.xlu0 %v2358, 110
  %v2411 = vpop.permute.xlu0 %2410
  %2412 = vrot.lane.b32.xlu0 %v2359, 110
  %v2413 = vpop.permute.xlu0 %2412
  %v2414 = vsel %vm311, %v2401, %v2403
  %v2415 = vsel %vm311, %v2403, %v2405
  %v2416 = vsel %vm311, %v2405, %v2407
  %v2417 = vsel %vm311, %v2407, %v2409
  %v2418 = vsel %vm311, %v2409, %v2411
  %v2419 = vsel %vm311, %v2411, %v2413
  %v2423 = vunpack.c.l.b16 %v2335
  %v2424 = vunpack.c.h.b16 %v2335
  %v2425 = vunpack.c.l.b16 %v2336
  %v2426 = vunpack.c.h.b16 %v2336
  %v2427 = vunpack.c.l.b16 %v2337
  %v2428 = vunpack.c.h.b16 %v2337
  %v2429 = vpack.c.b16 %v2423, %v2423
  %v2430 = vpack.c.b16 %v2424, %v2424
  %v2431 = vpack.c.b16 %v2425, %v2425
  %v2432 = vpack.c.b16 %v2426, %v2426
  %v2433 = vpack.c.b16 %v2427, %v2427
  %v2434 = vpack.c.b16 %v2428, %v2428
  %2435 = vrot.lane.b32.xlu0 %v2429, 109
  %v2436 = vpop.permute.xlu0 %2435
  %2437 = vrot.lane.b32.xlu0 %v2430, 109
  %v2438 = vpop.permute.xlu0 %2437
  %2439 = vrot.lane.b32.xlu0 %v2431, 109
  %v2440 = vpop.permute.xlu0 %2439
  %2441 = vrot.lane.b32.xlu0 %v2432, 109
  %v2442 = vpop.permute.xlu0 %2441
  %2443 = vrot.lane.b32.xlu0 %v2433, 109
  %v2444 = vpop.permute.xlu0 %2443
  %2445 = vrot.lane.b32.xlu0 %v2434, 109
  %v2446 = vpop.permute.xlu0 %2445
  %v2447 = vsel %vm345, %v2436, %v2438
  %v2448 = vsel %vm345, %v2438, %v2440
  %v2449 = vsel %vm345, %v2440, %v2442
  %v2450 = vsel %vm345, %v2442, %v2444
  %v2451 = vsel %vm345, %v2444, %v2446
  %v2456 = vunpack.c.l.b16 %v2338
  %v2457 = vunpack.c.h.b16 %v2338
  %v2458 = vunpack.c.l.b16 %v2339
  %v2459 = vunpack.c.h.b16 %v2339
  %v2460 = vunpack.c.l.b16 %v2340
  %v2461 = vunpack.c.h.b16 %v2340
  %v2462 = vunpack.c.l.b16 %v2341
  %v2463 = vpack.c.b16 %v2456, %v2456
  %v2464 = vpack.c.b16 %v2457, %v2457
  %v2465 = vpack.c.b16 %v2458, %v2458
  %v2466 = vpack.c.b16 %v2459, %v2459
  %v2467 = vpack.c.b16 %v2460, %v2460
  %v2468 = vpack.c.b16 %v2461, %v2461
  %v2469 = vpack.c.b16 %v2462, %v2462
  %2470 = vrot.lane.b32.xlu0 %v2463, 108
  %v2471 = vpop.permute.xlu0 %2470
  %2472 = vrot.lane.b32.xlu0 %v2464, 108
  %v2473 = vpop.permute.xlu0 %2472
  %2474 = vrot.lane.b32.xlu0 %v2465, 108
  %v2475 = vpop.permute.xlu0 %2474
  %2476 = vrot.lane.b32.xlu0 %v2466, 108
  %v2477 = vpop.permute.xlu0 %2476
  %2478 = vrot.lane.b32.xlu0 %v2467, 108
  %v2479 = vpop.permute.xlu0 %2478
  %2480 = vrot.lane.b32.xlu0 %v2468, 108
  %v2481 = vpop.permute.xlu0 %2480
  %2482 = vrot.lane.b32.xlu0 %v2469, 108
  %v2483 = vpop.permute.xlu0 %2482
  %v2484 = vsel %vm383, %v2471, %v2473
  %v2485 = vsel %vm383, %v2473, %v2475
  %v2486 = vsel %vm383, %v2475, %v2477
  %v2487 = vsel %vm383, %v2477, %v2479
  %v2488 = vsel %vm383, %v2479, %v2481
  %v2489 = vsel %vm383, %v2481, %v2483
  %2490 = vrot.lane.b32.xlu0 %v2463, 92
  %v2491 = vpop.permute.xlu0 %2490
  %2492 = vrot.lane.b32.xlu0 %v2464, 92
  %v2493 = vpop.permute.xlu0 %2492
  %2494 = vrot.lane.b32.xlu0 %v2465, 92
  %v2495 = vpop.permute.xlu0 %2494
  %2496 = vrot.lane.b32.xlu0 %v2466, 92
  %v2497 = vpop.permute.xlu0 %2496
  %2498 = vrot.lane.b32.xlu0 %v2467, 92
  %v2499 = vpop.permute.xlu0 %2498
  %2500 = vrot.lane.b32.xlu0 %v2468, 92
  %v2501 = vpop.permute.xlu0 %2500
  %2502 = vrot.lane.b32.xlu0 %v2469, 92
  %v2503 = vpop.permute.xlu0 %2502
  %v2504 = vsel %vm404, %v2491, %v2493
  %v2505 = vsel %vm404, %v2493, %v2495
  %v2506 = vsel %vm404, %v2495, %v2497
  %v2507 = vsel %vm404, %v2497, %v2499
  %v2508 = vsel %vm404, %v2499, %v2501
  %v2509 = vsel %vm404, %v2501, %v2503
  %2510 = vrot.lane.b32.xlu0 %v2463, 91
  %v2511 = vpop.permute.xlu0 %2510
  %2512 = vrot.lane.b32.xlu0 %v2464, 91
  %v2513 = vpop.permute.xlu0 %2512
  %2514 = vrot.lane.b32.xlu0 %v2465, 91
  %v2515 = vpop.permute.xlu0 %2514
  %2516 = vrot.lane.b32.xlu0 %v2466, 91
  %v2517 = vpop.permute.xlu0 %2516
  %2518 = vrot.lane.b32.xlu0 %v2467, 91
  %v2519 = vpop.permute.xlu0 %2518
  %2520 = vrot.lane.b32.xlu0 %v2468, 91
  %v2521 = vpop.permute.xlu0 %2520
  %2522 = vrot.lane.b32.xlu0 %v2469, 91
  %v2523 = vpop.permute.xlu0 %2522
  %v2524 = vsel %vm425, %v2511, %v2513
  %v2525 = vsel %vm425, %v2513, %v2515
  %v2526 = vsel %vm425, %v2515, %v2517
  %v2527 = vsel %vm425, %v2517, %v2519
  %v2528 = vsel %vm425, %v2519, %v2521
  %v2529 = vsel %vm425, %v2521, %v2523
  %2530 = vrot.lane.b32.xlu0 %v2463, 90
  %v2531 = vpop.permute.xlu0 %2530
  %2532 = vrot.lane.b32.xlu0 %v2464, 90
  %v2533 = vpop.permute.xlu0 %2532
  %2534 = vrot.lane.b32.xlu0 %v2465, 90
  %v2535 = vpop.permute.xlu0 %2534
  %2536 = vrot.lane.b32.xlu0 %v2466, 90
  %v2537 = vpop.permute.xlu0 %2536
  %2538 = vrot.lane.b32.xlu0 %v2467, 90
  %v2539 = vpop.permute.xlu0 %2538
  %2540 = vrot.lane.b32.xlu0 %v2468, 90
  %v2541 = vpop.permute.xlu0 %2540
  %2542 = vrot.lane.b32.xlu0 %v2469, 90
  %v2543 = vpop.permute.xlu0 %2542
  %v2544 = vsel %vm446, %v2531, %v2533
  %v2545 = vsel %vm446, %v2533, %v2535
  %v2546 = vsel %vm446, %v2535, %v2537
  %v2547 = vsel %vm446, %v2537, %v2539
  %v2548 = vsel %vm446, %v2539, %v2541
  %v2549 = vsel %vm446, %v2541, %v2543
  %v2552 = vsel %vm98, %v2353, %v2374
  %v2555 = vsel %vm98, %v2354, %v2375
  %v2558 = vsel %vm98, %v2355, %v2376
  %v2561 = vsel %vm98, %v2356, %v2377
  %v2564 = vsel %vm98, %v2357, %v2378
  %v2567 = vsel %vm98, %v2358, %v2379
  %v2570 = vsel %vm98, %v2359, %v2373
  %v2573 = vsel %vm98, %v2394, %v2414
  %v2576 = vsel %vm98, %v2395, %v2415
  %v2579 = vsel %vm98, %v2396, %v2416
  %v2582 = vsel %vm98, %v2397, %v2417
  %v2585 = vsel %vm98, %v2398, %v2418
  %v2588 = vsel %vm98, %v2399, %v2419
  %v2591 = vsel %vm98, %v2393, %v2413
  %v2594 = vsel %vm98, %v2436, %v2471
  %v2597 = vsel %vm98, %v2447, %v2484
  %v2600 = vsel %vm98, %v2448, %v2485
  %v2603 = vsel %vm98, %v2449, %v2486
  %v2606 = vsel %vm98, %v2450, %v2487
  %v2609 = vsel %vm98, %v2451, %v2488
  %v2612 = vsel %vm98, %v2446, %v2489
  %v2615 = vsel %vm98, %v2491, %v2511
  %v2618 = vsel %vm98, %v2504, %v2524
  %v2621 = vsel %vm98, %v2505, %v2525
  %v2624 = vsel %vm98, %v2506, %v2526
  %v2627 = vsel %vm98, %v2507, %v2527
  %v2630 = vsel %vm98, %v2508, %v2528
  %v2633 = vsel %vm98, %v2509, %v2529
  %v2634 = vld [vmem:[%s15] sm:$0xf]
  %2663 = vrot.lane.b32.xlu0 %v2552, 19
  %v2664 = vpop.permute.xlu0 %2663
  %2665 = vrot.lane.b32.xlu0 %v2555, 19
  %v2666 = vpop.permute.xlu0 %2665
  %2667 = vrot.lane.b32.xlu0 %v2558, 19
  %v2668 = vpop.permute.xlu0 %2667
  %2669 = vrot.lane.b32.xlu0 %v2561, 19
  %v2670 = vpop.permute.xlu0 %2669
  %2671 = vrot.lane.b32.xlu0 %v2564, 19
  %v2672 = vpop.permute.xlu0 %2671
  %2673 = vrot.lane.b32.xlu0 %v2567, 19
  %v2674 = vpop.permute.xlu0 %2673
  %2675 = vrot.lane.b32.xlu0 %v2570, 19
  %v2676 = vpop.permute.xlu0 %2675
  %2677 = vrot.lane.b32.xlu0 %v2573, 19
  %v2678 = vpop.permute.xlu0 %2677
  %2679 = vrot.lane.b32.xlu0 %v2576, 19
  %v2680 = vpop.permute.xlu0 %2679
  %2681 = vrot.lane.b32.xlu0 %v2579, 19
  %v2682 = vpop.permute.xlu0 %2681
  %2683 = vrot.lane.b32.xlu0 %v2582, 19
  %v2684 = vpop.permute.xlu0 %2683
  %2685 = vrot.lane.b32.xlu0 %v2585, 19
  %v2686 = vpop.permute.xlu0 %2685
  %2687 = vrot.lane.b32.xlu0 %v2588, 19
  %v2688 = vpop.permute.xlu0 %2687
  %2689 = vrot.lane.b32.xlu0 %v2591, 19
  %v2690 = vpop.permute.xlu0 %2689
  %2691 = vrot.lane.b32.xlu0 %v2594, 19
  %v2692 = vpop.permute.xlu0 %2691
  %2693 = vrot.lane.b32.xlu0 %v2597, 19
  %v2694 = vpop.permute.xlu0 %2693
  %2695 = vrot.lane.b32.xlu0 %v2600, 19
  %v2696 = vpop.permute.xlu0 %2695
  %2697 = vrot.lane.b32.xlu0 %v2603, 19
  %v2698 = vpop.permute.xlu0 %2697
  %2699 = vrot.lane.b32.xlu0 %v2606, 19
  %v2700 = vpop.permute.xlu0 %2699
  %2701 = vrot.lane.b32.xlu0 %v2609, 19
  %v2702 = vpop.permute.xlu0 %2701
  %2703 = vrot.lane.b32.xlu0 %v2612, 19
  %v2704 = vpop.permute.xlu0 %2703
  %2705 = vrot.lane.b32.xlu0 %v2615, 19
  %v2706 = vpop.permute.xlu0 %2705
  %2707 = vrot.lane.b32.xlu0 %v2618, 19
  %v2708 = vpop.permute.xlu0 %2707
  %2709 = vrot.lane.b32.xlu0 %v2621, 19
  %v2710 = vpop.permute.xlu0 %2709
  %2711 = vrot.lane.b32.xlu0 %v2624, 19
  %v2712 = vpop.permute.xlu0 %2711
  %2713 = vrot.lane.b32.xlu0 %v2627, 19
  %v2714 = vpop.permute.xlu0 %2713
  %2715 = vrot.lane.b32.xlu0 %v2630, 19
  %v2716 = vpop.permute.xlu0 %2715
  %2717 = vrot.lane.b32.xlu0 %v2633, 19
  %v2718 = vpop.permute.xlu0 %2717
  %2719 = vrot.lane.b32.xlu0 %v2531, 19
  %v2720 = vpop.permute.xlu0 %2719
  %2721 = vrot.lane.b32.xlu0 %v2544, 19
  %v2722 = vpop.permute.xlu0 %2721
  %2723 = vrot.lane.b32.xlu0 %v2545, 19
  %v2724 = vpop.permute.xlu0 %2723
  %2725 = vrot.lane.b32.xlu0 %v2546, 19
  %v2726 = vpop.permute.xlu0 %2725
  %2727 = vrot.lane.b32.xlu0 %v2547, 19
  %v2728 = vpop.permute.xlu0 %2727
  %2729 = vrot.lane.b32.xlu0 %v2548, 19
  %v2730 = vpop.permute.xlu0 %2729
  %2731 = vrot.lane.b32.xlu0 %v2549, 19
  %v2732 = vpop.permute.xlu0 %2731
  %v2733 = vsel %vm636, %v2664, %v2666
  %v2734 = vsel %vm636, %v2666, %v2668
  %v2735 = vsel %vm636, %v2668, %v2670
  %v2736 = vsel %vm636, %v2670, %v2672
  %v2737 = vsel %vm636, %v2672, %v2674
  %v2738 = vsel %vm636, %v2674, %v2676
  %v2739 = vsel %vm636, %v2678, %v2680
  %v2740 = vsel %vm636, %v2680, %v2682
  %v2741 = vsel %vm636, %v2682, %v2684
  %v2742 = vsel %vm636, %v2684, %v2686
  %v2743 = vsel %vm636, %v2686, %v2688
  %v2744 = vsel %vm636, %v2688, %v2690
  %v2745 = vsel %vm636, %v2692, %v2694
  %v2746 = vsel %vm636, %v2694, %v2696
  %v2747 = vsel %vm636, %v2696, %v2698
  %v2748 = vsel %vm636, %v2698, %v2700
  %v2749 = vsel %vm636, %v2700, %v2702
  %v2750 = vsel %vm636, %v2702, %v2704
  %v2751 = vsel %vm636, %v2706, %v2708
  %v2752 = vsel %vm636, %v2708, %v2710
  %v2753 = vsel %vm636, %v2710, %v2712
  %v2754 = vsel %vm636, %v2712, %v2714
  %v2755 = vsel %vm636, %v2714, %v2716
  %v2756 = vsel %vm636, %v2716, %v2718
  %v2757 = vsel %vm636, %v2720, %v2722
  %v2758 = vsel %vm636, %v2722, %v2724
  %v2759 = vsel %vm636, %v2724, %v2726
  %v2760 = vsel %vm636, %v2726, %v2728
  %v2761 = vsel %vm636, %v2728, %v2730
  %v2762 = vsel %vm636, %v2730, %v2732
  %v2788 = vsel %vm691, %v2634, 0
  %v2791 = vsel %vm98, %v2757, 0
  %v2794 = vsel %vm98, %v2758, 0
  %v2797 = vsel %vm98, %v2759, 0
  %v2800 = vsel %vm98, %v2760, 0
  %v2803 = vsel %vm98, %v2761, 0
  %v2806 = vsel %vm98, %v2762, 0
  %2808 = vmatpush.bf16.msra.mxu0 0
  %2809 = vmatpush.bf16.msra.mxu0 0
  %2810 = vmatpush.bf16.msra.mxu0 0
  %2811 = vmatpush.bf16.msra.mxu0 %v2791
  %2812 = vmatpush.bf16.msra.mxu0 %v2751
  %2813 = vmatpush.bf16.msra.mxu0 %v2745
  %2814 = vmatpush.bf16.msra.mxu0 %v2739
  %2815 = vmatpush.bf16.msra.mxu0 %v2733
  %2816 = vmatmul.bf16.gmra.mxu0 %v2788
  %v2817 = vpop.f32.mrf.mxu0
  %v2818 = vadd.f32 0.0, %v2817
  %v2819 = vpop.f32.mrf.mxu0
  %2820 = vdwg.mxu0
  %2821 = vmatpush.bf16.msra.mxu0 0
  %2822 = vmatpush.bf16.msra.mxu0 0
  %2823 = vmatpush.bf16.msra.mxu0 0
  %2824 = vmatpush.bf16.msra.mxu0 %v2794
  %2825 = vmatpush.bf16.msra.mxu0 %v2752
  %2826 = vmatpush.bf16.msra.mxu0 %v2746
  %2827 = vmatpush.bf16.msra.mxu0 %v2740
  %2828 = vmatpush.bf16.msra.mxu0 %v2734
  %2829 = vmatmul.bf16.gmra.mxu0 %v2788
  %v2830 = vpop.f32.mrf.mxu0
  %v2831 = vadd.f32 0.0, %v2830
  %v2832 = vpop.f32.mrf.mxu0
  %2833 = vdwg.mxu0
  %2834 = vmatpush.bf16.msra.mxu0 0
  %2835 = vmatpush.bf16.msra.mxu0 0
  %2836 = vmatpush.bf16.msra.mxu0 0
  %2837 = vmatpush.bf16.msra.mxu0 %v2797
  %2838 = vmatpush.bf16.msra.mxu0 %v2753
  %2839 = vmatpush.bf16.msra.mxu0 %v2747
  %2840 = vmatpush.bf16.msra.mxu0 %v2741
  %2841 = vmatpush.bf16.msra.mxu0 %v2735
  %2842 = vmatmul.bf16.gmra.mxu0 %v2788
  %v2843 = vpop.f32.mrf.mxu0
  %v2844 = vadd.f32 0.0, %v2843
  %v2845 = vpop.f32.mrf.mxu0
  %2846 = vdwg.mxu0
  %2847 = vmatpush.bf16.msra.mxu0 0
  %2848 = vmatpush.bf16.msra.mxu0 0
  %2849 = vmatpush.bf16.msra.mxu0 0
  %2850 = vmatpush.bf16.msra.mxu0 %v2800
  %2851 = vmatpush.bf16.msra.mxu0 %v2754
  %2852 = vmatpush.bf16.msra.mxu0 %v2748
  %2853 = vmatpush.bf16.msra.mxu0 %v2742
  %2854 = vmatpush.bf16.msra.mxu0 %v2736
  %2855 = vmatmul.bf16.gmra.mxu0 %v2788
  %v2856 = vpop.f32.mrf.mxu0
  %v2857 = vadd.f32 0.0, %v2856
  %v2858 = vpop.f32.mrf.mxu0
  %2859 = vdwg.mxu0
  %2860 = vmatpush.bf16.msra.mxu0 0
  %2861 = vmatpush.bf16.msra.mxu0 0
  %2862 = vmatpush.bf16.msra.mxu0 0
  %2863 = vmatpush.bf16.msra.mxu0 %v2803
  %2864 = vmatpush.bf16.msra.mxu0 %v2755
  %2865 = vmatpush.bf16.msra.mxu0 %v2749
  %2866 = vmatpush.bf16.msra.mxu0 %v2743
  %2867 = vmatpush.bf16.msra.mxu0 %v2737
  %2868 = vmatmul.bf16.gmra.mxu0 %v2788
  %v2869 = vpop.f32.mrf.mxu0
  %v2870 = vadd.f32 0.0, %v2869
  %v2871 = vpop.f32.mrf.mxu0
  %2872 = vdwg.mxu0
  %2873 = vmatpush.bf16.msra.mxu0 0
  %2874 = vmatpush.bf16.msra.mxu0 0
  %2875 = vmatpush.bf16.msra.mxu0 0
  %2876 = vmatpush.bf16.msra.mxu0 %v2806
  %2877 = vmatpush.bf16.msra.mxu0 %v2756
  %2878 = vmatpush.bf16.msra.mxu0 %v2750
  %2879 = vmatpush.bf16.msra.mxu0 %v2744
  %2880 = vmatpush.bf16.msra.mxu0 %v2738
  %2881 = vmatmul.bf16.gmra.mxu0 %v2788
  %v2882 = vpop.f32.mrf.mxu0
  %v2883 = vadd.f32 0.0, %v2882
  %v2884 = vpop.f32.mrf.mxu0
  %2885 = vdwg.mxu0
  %v2886 = vmul.f32 %v2818, %v196
  %v2887 = vmul.f32 %v2831, %v197
  %v2888 = vmul.f32 %v2844, %v198
  %v2889 = vmul.f32 %v2857, %v199
  %v2890 = vmul.f32 %v2870, %v200
  %v2891 = vmul.f32 %v2883, %v201
  %v2892 = vadd.f32 %v2886, %v2887
  %v2893 = vadd.f32 %v2892, %v2888
  %v2894 = vadd.f32 %v2893, %v2889
  %v2895 = vadd.f32 %v2894, %v2890
  %v2896 = vadd.f32 %v2895, %v2891
  %2897 = vadd.xlane.f32.xlu0 %v2896
  %v2898 = vpop.xlane.xlu0 %2897
  %v2899 = vmul.f32 %v2898, 0.001953125
  %v2900 = vmul.f32 %v2886, %v2818
  %v2901 = vmul.f32 %v2887, %v2831
  %v2902 = vmul.f32 %v2888, %v2844
  %v2903 = vmul.f32 %v2889, %v2857
  %v2904 = vmul.f32 %v2890, %v2870
  %v2905 = vmul.f32 %v2891, %v2883
  %v2906 = vadd.f32 %v2900, %v2901
  %v2907 = vadd.f32 %v2906, %v2902
  %v2908 = vadd.f32 %v2907, %v2903
  %v2909 = vadd.f32 %v2908, %v2904
  %v2910 = vadd.f32 %v2909, %v2905
  %2911 = vadd.xlane.f32.xlu0 %v2910
  %v2912 = vpop.xlane.xlu0 %2911
  %v2913 = vmul.f32 %v2912, 0.001953125
  %v2914 = vld [vmem:[%s16] sm:$0xff]
  %v2915 = vmul.f32 %v2899, %v2899
  %v2916 = vsub.f32 %v2913, %v2915
  %v2917 = vadd.f32 %v2916, 1e-05
  %v2918 = vrsqrt.pop %v2917
  %v2919 = vmul.f32 %v2918, %v2917
  %v2920 = vmul.f32 %v2919, %v2918
  %v2921 = vmul.f32 0.5, %v2920
  %v2922 = vsub.f32 1.5, %v2921
  %v2923 = vmul.f32 %v2918, %v2922
  %vm2924 = vweird.f32 %v2917
  %vm2925 = vweird.f32 %v2918
  %vm2926 = vmor %vm2924, %vm2925
  %v2927 = vsel %vm2926, %v2918, %v2923
  %v2928 = vmul.f32 %v2914, %v2927
  %v2929 = vld [vmem:[%s17] sm:$0xff]
  %v2930 = vmul.f32 %v2899, %v2928
  %v2931 = vsub.f32 %v2929, %v2930
  %2933 = vset.pattern.permute.xlu0 0
  %2934 = vperm.xlu0 %2933, %v2928
  %v2935 = vpop.permute.xlu0 %2934
  %v2937 = vmul.f32 %v2818, %v2935
  %v2938 = vmul.f32 %v2831, %v2935
  %v2939 = vmul.f32 %v2844, %v2935
  %v2940 = vmul.f32 %v2857, %v2935
  %v2941 = vmul.f32 %v2870, %v2935
  %v2942 = vmul.f32 %v2883, %v2935
  %2944 = vset.pattern.permute.xlu0 0
  %2945 = vperm.xlu0 %2944, %v2931
  %v2946 = vpop.permute.xlu0 %2945
  %v2948 = vadd.f32 %v2937, %v2946
  %v2949 = vadd.f32 %v2938, %v2946
  %v2950 = vadd.f32 %v2939, %v2946
  %v2951 = vadd.f32 %v2940, %v2946
  %v2952 = vadd.f32 %v2941, %v2946
  %v2953 = vadd.f32 %v2942, %v2946
  %v2954 = vld [vmem:[#allocation3] sm:$0xff]
  %v2955 = vld [vmem:[#allocation3 + $0x8] sm:$0xff]
  %v2956 = vld [vmem:[#allocation3 + $0x10] sm:$0xff]
  %v2957 = vld [vmem:[#allocation3 + $0x18] sm:$0xff]
  %v2958 = vld [vmem:[#allocation3 + $0x20] sm:$0xff]
  %v2959 = vld [vmem:[#allocation3 + $0x28] sm:$0xff]
  %v2960 = vadd.f32 %v2948, %v2954
  %v2961 = vadd.f32 %v2949, %v2955
  %v2962 = vadd.f32 %v2950, %v2956
  %v2963 = vadd.f32 %v2951, %v2957
  %v2964 = vadd.f32 %v2952, %v2958
  %v2965 = vadd.f32 %v2953, %v2959
  %v2966 = vmul.f32 %v2960, 0.01
  %v2967 = vmul.f32 %v2961, 0.01
  %v2968 = vmul.f32 %v2962, 0.01
  %v2969 = vmul.f32 %v2963, 0.01
  %v2970 = vmul.f32 %v2964, 0.01
  %v2971 = vmul.f32 %v2965, 0.01
  %v2972 = vmax.f32 %v2960, %v2966
  %v2973 = vmax.f32 %v2961, %v2967
  %v2974 = vmax.f32 %v2962, %v2968
  %v2975 = vmax.f32 %v2963, %v2969
  %v2976 = vmax.f32 %v2964, %v2970
  %v2977 = vmax.f32 %v2965, %v2971
  %v2978 = vmul.f32 %v2972, %v196
  %v2979 = vmul.f32 %v2973, %v197
  %v2980 = vmul.f32 %v2974, %v198
  %v2981 = vmul.f32 %v2975, %v199
  %v2982 = vmul.f32 %v2976, %v200
  %v2983 = vmul.f32 %v2977, %v201
  %2984 = vst [vmem:[%s18] sm:$0xff] %v2978
  %2985 = vst [vmem:[%s18 + $0x8] sm:$0xff] %v2979
  %2986 = vst [vmem:[%s18 + $0x10] sm:$0xff] %v2980
  %2987 = vst [vmem:[%s18 + $0x18] sm:$0xff] %v2981
  %2988 = vst [vmem:[%s18 + $0x20] sm:$0xff] %v2982
  %2989 = vst [vmem:[%s18 + $0x28] sm:$0xff] %v2983
  // Predicated region
  $region74: #{res_module_forward.1} parent=0 // pred_check
    _
  $region75: #{res_module_forward.1} parent=0 // pred_check_branch
    %2991 = sbr.rel (0) target = $region77
  $region76: #{res_module_forward.1} parent=0 // pred_region
    _
  $region77: #{res_module_forward.1} parent=0 // pred_fallthru
    _
  // Predicated region
  $region78: #{res_module_forward.1} parent=0 // pred_check
    _
  $region79: #{res_module_forward.1} parent=0 // pred_check_branch
    %2993 = sbr.rel (0) target = $region81
  $region80: #{res_module_forward.1} parent=0 // pred_region
    _
  $region81: #{res_module_forward.1} parent=0 // pred_fallthru
    _

</llo_original>
